<compile_context>
chip_gen: v7x
topology: tpu7x:2x2x1
jax: 0.10.0
libtpu: 0.0.40
codegen_flags: <defaults>
</compile_context>

<pallas_src>
import math

import jax
import jax.numpy as jnp
from jax.experimental import pallas as pl
from jax.experimental.pallas import tpu as pltpu

# ---- problem sizes (small, consistent with the module: seq=8, hidden=32) ----
B = 2                   # batch
S = 8                   # sequence length
H = 32                  # hidden size (all_head_size)
NUM_HEADS = 4           # num_attention_heads
HEAD = H // NUM_HEADS   # attention_head_size
BH = NUM_HEADS * B      # flattened (head, batch) contraction batch
INV_SQRT_D = 1.0 / math.sqrt(HEAD)

QMIN, QMAX = 0.0, 255.0          # quint8 per-tensor affine fake quant
EPS = 1.1920929e-07              # torch.finfo(torch.float32).eps


def _fake_quant(x):
    """Per-tensor affine fake quantization (observer + fake_quant, first pass)."""
    mn = jnp.minimum(jnp.min(x), 0.0)
    mx = jnp.maximum(jnp.max(x), 0.0)
    scale = jnp.maximum((mx - mn) / (QMAX - QMIN), EPS)
    inv_scale = 1.0 / scale                       # scalar reciprocal, then vmul
    zp = jnp.clip(jnp.round(QMIN - mn * inv_scale), QMIN, QMAX)
    xq = jnp.clip(jnp.round(x * inv_scale + zp), QMIN, QMAX)
    return (xq - zp) * scale


def _qat_bert_self_attention_kernel(
    x_ref,       # (B*S, H)       f32 hidden states (flattened batch*seq)
    wqkv_ref,    # (H, 3H)        f32 fused [Wq | Wk | Wv] (already (in,out))
    bqkv_ref,    # (1, 3H)        f32 fused bias
    mask_ref,    # (NH*B, S, S)   f32 additive mask, head-major batch order
    out_ref,     # (B*S, H)       f32
):
    x = x_ref[...]                                              # (16, 32)

    # --- single fused, full-width QKV projection on the MXU -----------------
    qkv = jnp.dot(x, wqkv_ref[...],
                  preferred_element_type=jnp.float32) + bqkv_ref[...]   # (16, 96)

    def split_heads(t):  # (B*S, H) -> (NH*B, S, HEAD), head-major / batch-minor
        parts = [t[:, h * HEAD:(h + 1) * HEAD].reshape(1, B, S, HEAD)
                 for h in range(NUM_HEADS)]
        return jnp.concatenate(parts, axis=0).reshape(BH, S, HEAD)

    q = split_heads(qkv[:, 0:H])
    k = split_heads(qkv[:, H:2 * H])
    v = split_heads(qkv[:, 2 * H:3 * H])

    # --- batched scores over all (head, batch) pairs -------------------------
    scores = jnp.einsum('bqd,bkd->bqk', q, k,
                        preferred_element_type=jnp.float32)     # (8, 8, 8)
    scores = _fake_quant(scores)                                # att_score_fakeq
    scores = scores * INV_SQRT_D + mask_ref[...]

    # --- softmax (recip-mul instead of vector divide) ------------------------
    m = jnp.max(scores, axis=-1, keepdims=True)
    e = jnp.exp(scores - m)
    probs = e * pl.reciprocal(jnp.sum(e, axis=-1, keepdims=True))
    probs = _fake_quant(probs)                                  # att_probs_fakeq
    # TODO(synk): nn.Dropout omitted (identity at inference / eval mode).

    # --- batched context = probs @ V ------------------------------------------
    ctx = jnp.einsum('bqk,bkd->bqd', probs, v,
                     preferred_element_type=jnp.float32)        # (8, 8, 8)
    ctx = _fake_quant(ctx)                                      # ctx_fakeq

    # --- merge heads in-register -> one lane-dense (B*S, H) store ------------
    ctx2 = ctx.reshape(NUM_HEADS, B * S, HEAD)
    out_ref[...] = jnp.concatenate([ctx2[h] for h in range(NUM_HEADS)], axis=-1)


@jax.jit
def qaware_bert_self_attention(x, wq, bq, wk, bk, wv, bv, mask):
    # wrapper-side layout plumbing (cheap XLA ops, no data-dependent control):
    #  * fuse QKV weights/biases
    #  * pre-broadcast the additive mask to the kernel's (head, batch) order
    wqkv = jnp.concatenate([wq, wk, wv], axis=1)                 # (H, 3H)
    bqkv = jnp.concatenate([bq, bk, bv]).reshape(1, 3 * H)       # (1, 3H)
    mask_hb = jnp.broadcast_to(mask.reshape(1, B, 1, S),
                               (NUM_HEADS, B, S, S)).reshape(BH, S, S)

    vmem = lambda: pl.BlockSpec(memory_space=pltpu.MemorySpace.VMEM)
    out2d = pl.pallas_call(
        _qat_bert_self_attention_kernel,
        out_shape=jax.ShapeDtypeStruct((B * S, H), jnp.float32),
        in_specs=[vmem() for _ in range(4)],
        out_specs=vmem(),
    )(x.reshape(B * S, H), wqkv, bqkv, mask_hb)
    return out2d.reshape(B, S, H)


def _reference(x, wq, bq, wk, bk, wv, bv, mask):
    """Pure-JAX reference mirroring the PyTorch forward."""
    def split_heads(t):  # (B,S,H) -> (B,NH,S,HEAD)
        return t.reshape(B, S, NUM_HEADS, HEAD).transpose(0, 2, 1, 3)

    q = split_heads(x @ wq + bq)
    k = split_heads(x @ wk + bk)
    v = split_heads(x @ wv + bv)
    scores = jnp.einsum('bhld,bhrd->bhlr', q, k)
    scores = _fake_quant(scores)
    scores = scores / math.sqrt(HEAD)
    scores = scores + mask
    m = jnp.max(scores, axis=-1, keepdims=True)
    e = jnp.exp(scores - m)
    probs = e / jnp.sum(e, axis=-1, keepdims=True)
    probs = _fake_quant(probs)
    ctx = jnp.einsum('bhlr,bhrd->bhld', probs, v)
    ctx = _fake_quant(ctx)
    return ctx.transpose(0, 2, 1, 3).reshape(B, S, H)


if __name__ == "__main__":
    key = jax.random.PRNGKey(0)
    kx, kwq, kbq, kwk, kbk, kwv, kbv = jax.random.split(key, 7)

    lim = 1.0 / math.sqrt(H)  # nn.Linear-style uniform init
    x = jax.random.normal(kx, (B, S, H), jnp.float32)
    wq = jax.random.uniform(kwq, (H, H), jnp.float32, -lim, lim)
    wk = jax.random.uniform(kwk, (H, H), jnp.float32, -lim, lim)
    wv = jax.random.uniform(kwv, (H, H), jnp.float32, -lim, lim)
    bq = jax.random.uniform(kbq, (H,), jnp.float32, -lim, lim)
    bk = jax.random.uniform(kbk, (H,), jnp.float32, -lim, lim)
    bv = jax.random.uniform(kbv, (H,), jnp.float32, -lim, lim)

    # additive attention mask: last two key positions of batch 1 are masked
    mask = jnp.zeros((B, 1, 1, S), jnp.float32)
    mask = mask.at[1, :, :, S - 2:].set(-10000.0)

    out = qaware_bert_self_attention(x, wq, bq, wk, bk, wv, bv, mask)
    out = jax.block_until_ready(out)

    ref = _reference(x, wq, bq, wk, bk, wv, bv, mask)
    # loose tolerance: MXU vs XLA f32 matmul precision + fake-quant rounding
    assert out.shape == (B, S, H)
    assert bool(jnp.all(jnp.isfinite(out)))
    assert bool(jnp.allclose(out, ref, rtol=5e-2, atol=5e-2)), "mismatch vs reference"

    print("KERNEL_OK")
</pallas_src>

<mosaic_0001>
module attributes {stable_mosaic.version = 11 : i64} {
  func.func @_qat_bert_self_attention_kernel(%arg0: memref<16x32xf32, #tpu.memory_space<vmem>>, %arg1: memref<32x96xf32, #tpu.memory_space<vmem>>, %arg2: memref<1x96xf32, #tpu.memory_space<vmem>>, %arg3: memref<8x8x8xf32, #tpu.memory_space<vmem>>, %arg4: memref<16x32xf32, #tpu.memory_space<vmem>>) attributes {dimension_semantics = [], scalar_prefetch = 0 : i64, scratch_operands = 0 : i64, tpu.core_type = #tpu.core_type<tc>} {
    %c0 = arith.constant 0 : index
    %c0_0 = arith.constant 0 : index
    %0 = vector.load %arg0[%c0, %c0_0] : memref<16x32xf32, #tpu.memory_space<vmem>>, vector<16x32xf32>
    %c0_1 = arith.constant 0 : index
    %c0_2 = arith.constant 0 : index
    %1 = vector.load %arg1[%c0_1, %c0_2] : memref<32x96xf32, #tpu.memory_space<vmem>>, vector<32x96xf32>
    %cst = arith.constant dense<0.000000e+00> : vector<16x96xf32>
    %2 = tpu.matmul %0, %1, %cst {dimension_numbers = #tpu.dot_dimension_numbers<[1], [0], [0], [1], [0, 0, 1, 1], [], []>} : vector<16x32xf32>, vector<32x96xf32>, vector<16x96xf32> -> vector<16x96xf32>
    %c0_3 = arith.constant 0 : index
    %c0_4 = arith.constant 0 : index
    %3 = vector.load %arg2[%c0_3, %c0_4] : memref<1x96xf32, #tpu.memory_space<vmem>>, vector<1x96xf32>
    %4 = vector.broadcast %3 : vector<1x96xf32> to vector<16x96xf32>
    %5 = arith.addf %2, %4 : vector<16x96xf32>
    %6 = vector.extract_strided_slice %5 {offsets = [0, 0], sizes = [16, 32], strides = [1, 1]} : vector<16x96xf32> to vector<16x32xf32>
    %7 = vector.extract_strided_slice %6 {offsets = [0, 0], sizes = [16, 8], strides = [1, 1]} : vector<16x32xf32> to vector<16x8xf32>
    %8 = vector.shape_cast %7 : vector<16x8xf32> to vector<1x2x8x8xf32>
    %9 = vector.extract_strided_slice %6 {offsets = [0, 8], sizes = [16, 8], strides = [1, 1]} : vector<16x32xf32> to vector<16x8xf32>
    %10 = vector.shape_cast %9 : vector<16x8xf32> to vector<1x2x8x8xf32>
    %11 = vector.extract_strided_slice %6 {offsets = [0, 16], sizes = [16, 8], strides = [1, 1]} : vector<16x32xf32> to vector<16x8xf32>
    %12 = vector.shape_cast %11 : vector<16x8xf32> to vector<1x2x8x8xf32>
    %13 = vector.extract_strided_slice %6 {offsets = [0, 24], sizes = [16, 8], strides = [1, 1]} : vector<16x32xf32> to vector<16x8xf32>
    %14 = vector.shape_cast %13 : vector<16x8xf32> to vector<1x2x8x8xf32>
    %15 = tpu.concatenate %8, %10, %12, %14 in 0 : vector<1x2x8x8xf32>, vector<1x2x8x8xf32>, vector<1x2x8x8xf32>, vector<1x2x8x8xf32> -> vector<4x2x8x8xf32>
    %16 = vector.shape_cast %15 : vector<4x2x8x8xf32> to vector<8x8x8xf32>
    %17 = vector.extract_strided_slice %5 {offsets = [0, 32], sizes = [16, 32], strides = [1, 1]} : vector<16x96xf32> to vector<16x32xf32>
    %18 = vector.extract_strided_slice %17 {offsets = [0, 0], sizes = [16, 8], strides = [1, 1]} : vector<16x32xf32> to vector<16x8xf32>
    %19 = vector.shape_cast %18 : vector<16x8xf32> to vector<1x2x8x8xf32>
    %20 = vector.extract_strided_slice %17 {offsets = [0, 8], sizes = [16, 8], strides = [1, 1]} : vector<16x32xf32> to vector<16x8xf32>
    %21 = vector.shape_cast %20 : vector<16x8xf32> to vector<1x2x8x8xf32>
    %22 = vector.extract_strided_slice %17 {offsets = [0, 16], sizes = [16, 8], strides = [1, 1]} : vector<16x32xf32> to vector<16x8xf32>
    %23 = vector.shape_cast %22 : vector<16x8xf32> to vector<1x2x8x8xf32>
    %24 = vector.extract_strided_slice %17 {offsets = [0, 24], sizes = [16, 8], strides = [1, 1]} : vector<16x32xf32> to vector<16x8xf32>
    %25 = vector.shape_cast %24 : vector<16x8xf32> to vector<1x2x8x8xf32>
    %26 = tpu.concatenate %19, %21, %23, %25 in 0 : vector<1x2x8x8xf32>, vector<1x2x8x8xf32>, vector<1x2x8x8xf32>, vector<1x2x8x8xf32> -> vector<4x2x8x8xf32>
    %27 = vector.shape_cast %26 : vector<4x2x8x8xf32> to vector<8x8x8xf32>
    %28 = vector.extract_strided_slice %5 {offsets = [0, 64], sizes = [16, 32], strides = [1, 1]} : vector<16x96xf32> to vector<16x32xf32>
    %29 = vector.extract_strided_slice %28 {offsets = [0, 0], sizes = [16, 8], strides = [1, 1]} : vector<16x32xf32> to vector<16x8xf32>
    %30 = vector.shape_cast %29 : vector<16x8xf32> to vector<1x2x8x8xf32>
    %31 = vector.extract_strided_slice %28 {offsets = [0, 8], sizes = [16, 8], strides = [1, 1]} : vector<16x32xf32> to vector<16x8xf32>
    %32 = vector.shape_cast %31 : vector<16x8xf32> to vector<1x2x8x8xf32>
    %33 = vector.extract_strided_slice %28 {offsets = [0, 16], sizes = [16, 8], strides = [1, 1]} : vector<16x32xf32> to vector<16x8xf32>
    %34 = vector.shape_cast %33 : vector<16x8xf32> to vector<1x2x8x8xf32>
    %35 = vector.extract_strided_slice %28 {offsets = [0, 24], sizes = [16, 8], strides = [1, 1]} : vector<16x32xf32> to vector<16x8xf32>
    %36 = vector.shape_cast %35 : vector<16x8xf32> to vector<1x2x8x8xf32>
    %37 = tpu.concatenate %30, %32, %34, %36 in 0 : vector<1x2x8x8xf32>, vector<1x2x8x8xf32>, vector<1x2x8x8xf32>, vector<1x2x8x8xf32> -> vector<4x2x8x8xf32>
    %38 = vector.shape_cast %37 : vector<4x2x8x8xf32> to vector<8x8x8xf32>
    "tpu.trace_start"() <{level = 10 : i32, message = "bqd,bkd->bqk"}> : () -> ()
    %cst_5 = arith.constant dense<0.000000e+00> : vector<8x8x8xf32>
    %39 = tpu.matmul %16, %27, %cst_5 {dimension_numbers = #tpu.dot_dimension_numbers<[2], [2], [1], [1], [0, 0, 0, 1, 1, 1], [0], [0]>} : vector<8x8x8xf32>, vector<8x8x8xf32>, vector<8x8x8xf32> -> vector<8x8x8xf32>
    "tpu.trace_stop"() : () -> ()
    %40 = vector.shape_cast %39 : vector<8x8x8xf32> to vector<1x8x8x8xf32>
    %cst_6 = arith.constant dense<0x7F800000> : vector<1xf32>
    %41 = vector.multi_reduction <minimumf>, %40, %cst_6 [1, 2, 3] : vector<1x8x8x8xf32> to vector<1xf32>
    %42 = vector.shape_cast %41 : vector<1xf32> to vector<1x1x1x1xf32>
    %43 = vector.extract %42[0, 0, 0, 0] : f32 from vector<1x1x1x1xf32>
    %cst_7 = arith.constant 0.000000e+00 : f32
    %44 = arith.minimumf %43, %cst_7 : f32
    %45 = vector.shape_cast %39 : vector<8x8x8xf32> to vector<1x8x8x8xf32>
    %cst_8 = arith.constant dense<0xFF800000> : vector<1xf32>
    %46 = vector.multi_reduction <maximumf>, %45, %cst_8 [1, 2, 3] : vector<1x8x8x8xf32> to vector<1xf32>
    %47 = vector.shape_cast %46 : vector<1xf32> to vector<1x1x1x1xf32>
    %48 = vector.extract %47[0, 0, 0, 0] : f32 from vector<1x1x1x1xf32>
    %cst_9 = arith.constant 0.000000e+00 : f32
    %49 = arith.maximumf %48, %cst_9 : f32
    %50 = arith.subf %49, %44 : f32
    %cst_10 = arith.constant 2.550000e+02 : f32
    %51 = arith.divf %50, %cst_10 : f32
    %cst_11 = arith.constant 1.1920929E-7 : f32
    %52 = arith.maximumf %51, %cst_11 : f32
    %cst_12 = arith.constant 1.000000e+00 : f32
    %53 = arith.divf %cst_12, %52 : f32
    %54 = arith.mulf %44, %53 : f32
    %cst_13 = arith.constant 0.000000e+00 : f32
    %55 = arith.subf %cst_13, %54 : f32
    %56 = math.roundeven %55 : f32
    %cst_14 = arith.constant 0.000000e+00 : f32
    %cst_15 = arith.constant 2.550000e+02 : f32
    %57 = arith.maximumf %cst_14, %56 : f32
    %58 = arith.minimumf %cst_15, %57 : f32
    %59 = vector.broadcast %53 : f32 to vector<8x8x8xf32>
    %60 = arith.mulf %39, %59 : vector<8x8x8xf32>
    %61 = vector.broadcast %58 : f32 to vector<8x8x8xf32>
    %62 = arith.addf %60, %61 : vector<8x8x8xf32>
    %63 = math.roundeven %62 : vector<8x8x8xf32>
    %cst_16 = arith.constant 0.000000e+00 : f32
    %cst_17 = arith.constant 2.550000e+02 : f32
    %64 = vector.broadcast %cst_16 : f32 to vector<8x8x8xf32>
    %65 = arith.maximumf %64, %63 : vector<8x8x8xf32>
    %66 = vector.broadcast %cst_17 : f32 to vector<8x8x8xf32>
    %67 = arith.minimumf %66, %65 : vector<8x8x8xf32>
    %68 = vector.broadcast %58 : f32 to vector<8x8x8xf32>
    %69 = arith.subf %67, %68 : vector<8x8x8xf32>
    %70 = vector.broadcast %52 : f32 to vector<8x8x8xf32>
    %71 = arith.mulf %69, %70 : vector<8x8x8xf32>
    %cst_18 = arith.constant 0.353553385 : f32
    %72 = vector.broadcast %cst_18 : f32 to vector<8x8x8xf32>
    %73 = arith.mulf %71, %72 : vector<8x8x8xf32>
    %c0_19 = arith.constant 0 : index
    %c0_20 = arith.constant 0 : index
    %c0_21 = arith.constant 0 : index
    %74 = vector.load %arg3[%c0_19, %c0_20, %c0_21] : memref<8x8x8xf32, #tpu.memory_space<vmem>>, vector<8x8x8xf32>
    %75 = arith.addf %73, %74 : vector<8x8x8xf32>
    %cst_22 = arith.constant dense<0xFF800000> : vector<8x8xf32>
    %76 = vector.multi_reduction <maximumf>, %75, %cst_22 [2] : vector<8x8x8xf32> to vector<8x8xf32>
    %77 = vector.shape_cast %76 : vector<8x8xf32> to vector<8x8x1xf32>
    %78 = vector.broadcast %77 : vector<8x8x1xf32> to vector<8x8x8xf32>
    %79 = arith.subf %75, %78 : vector<8x8x8xf32>
    %80 = math.exp %79 : vector<8x8x8xf32>
    %cst_23 = arith.constant dense<0.000000e+00> : vector<8x8xf32>
    %81 = vector.multi_reduction <add>, %80, %cst_23 [2] : vector<8x8x8xf32> to vector<8x8xf32>
    %82 = vector.shape_cast %81 : vector<8x8xf32> to vector<8x8x1xf32>
    %83 = tpu.reciprocal %82 : vector<8x8x1xf32> -> vector<8x8x1xf32>
    %84 = vector.broadcast %83 : vector<8x8x1xf32> to vector<8x8x8xf32>
    %85 = arith.mulf %80, %84 : vector<8x8x8xf32>
    %86 = vector.shape_cast %85 : vector<8x8x8xf32> to vector<1x8x8x8xf32>
    %cst_24 = arith.constant dense<0x7F800000> : vector<1xf32>
    %87 = vector.multi_reduction <minimumf>, %86, %cst_24 [1, 2, 3] : vector<1x8x8x8xf32> to vector<1xf32>
    %88 = vector.shape_cast %87 : vector<1xf32> to vector<1x1x1x1xf32>
    %89 = vector.extract %88[0, 0, 0, 0] : f32 from vector<1x1x1x1xf32>
    %cst_25 = arith.constant 0.000000e+00 : f32
    %90 = arith.minimumf %89, %cst_25 : f32
    %91 = vector.shape_cast %85 : vector<8x8x8xf32> to vector<1x8x8x8xf32>
    %cst_26 = arith.constant dense<0xFF800000> : vector<1xf32>
    %92 = vector.multi_reduction <maximumf>, %91, %cst_26 [1, 2, 3] : vector<1x8x8x8xf32> to vector<1xf32>
    %93 = vector.shape_cast %92 : vector<1xf32> to vector<1x1x1x1xf32>
    %94 = vector.extract %93[0, 0, 0, 0] : f32 from vector<1x1x1x1xf32>
    %cst_27 = arith.constant 0.000000e+00 : f32
    %95 = arith.maximumf %94, %cst_27 : f32
    %96 = arith.subf %95, %90 : f32
    %cst_28 = arith.constant 2.550000e+02 : f32
    %97 = arith.divf %96, %cst_28 : f32
    %cst_29 = arith.constant 1.1920929E-7 : f32
    %98 = arith.maximumf %97, %cst_29 : f32
    %cst_30 = arith.constant 1.000000e+00 : f32
    %99 = arith.divf %cst_30, %98 : f32
    %100 = arith.mulf %90, %99 : f32
    %cst_31 = arith.constant 0.000000e+00 : f32
    %101 = arith.subf %cst_31, %100 : f32
    %102 = math.roundeven %101 : f32
    %cst_32 = arith.constant 0.000000e+00 : f32
    %cst_33 = arith.constant 2.550000e+02 : f32
    %103 = arith.maximumf %cst_32, %102 : f32
    %104 = arith.minimumf %cst_33, %103 : f32
    %105 = vector.broadcast %99 : f32 to vector<8x8x8xf32>
    %106 = arith.mulf %85, %105 : vector<8x8x8xf32>
    %107 = vector.broadcast %104 : f32 to vector<8x8x8xf32>
    %108 = arith.addf %106, %107 : vector<8x8x8xf32>
    %109 = math.roundeven %108 : vector<8x8x8xf32>
    %cst_34 = arith.constant 0.000000e+00 : f32
    %cst_35 = arith.constant 2.550000e+02 : f32
    %110 = vector.broadcast %cst_34 : f32 to vector<8x8x8xf32>
    %111 = arith.maximumf %110, %109 : vector<8x8x8xf32>
    %112 = vector.broadcast %cst_35 : f32 to vector<8x8x8xf32>
    %113 = arith.minimumf %112, %111 : vector<8x8x8xf32>
    %114 = vector.broadcast %104 : f32 to vector<8x8x8xf32>
    %115 = arith.subf %113, %114 : vector<8x8x8xf32>
    %116 = vector.broadcast %98 : f32 to vector<8x8x8xf32>
    %117 = arith.mulf %115, %116 : vector<8x8x8xf32>
    "tpu.trace_start"() <{level = 10 : i32, message = "bqk,bkd->bqd"}> : () -> ()
    %cst_36 = arith.constant dense<0.000000e+00> : vector<8x8x8xf32>
    %118 = tpu.matmul %117, %38, %cst_36 {dimension_numbers = #tpu.dot_dimension_numbers<[2], [1], [1], [2], [0, 0, 0, 1, 1, 2], [0], [0]>} : vector<8x8x8xf32>, vector<8x8x8xf32>, vector<8x8x8xf32> -> vector<8x8x8xf32>
    "tpu.trace_stop"() : () -> ()
    %119 = vector.shape_cast %118 : vector<8x8x8xf32> to vector<1x8x8x8xf32>
    %cst_37 = arith.constant dense<0x7F800000> : vector<1xf32>
    %120 = vector.multi_reduction <minimumf>, %119, %cst_37 [1, 2, 3] : vector<1x8x8x8xf32> to vector<1xf32>
    %121 = vector.shape_cast %120 : vector<1xf32> to vector<1x1x1x1xf32>
    %122 = vector.extract %121[0, 0, 0, 0] : f32 from vector<1x1x1x1xf32>
    %cst_38 = arith.constant 0.000000e+00 : f32
    %123 = arith.minimumf %122, %cst_38 : f32
    %124 = vector.shape_cast %118 : vector<8x8x8xf32> to vector<1x8x8x8xf32>
    %cst_39 = arith.constant dense<0xFF800000> : vector<1xf32>
    %125 = vector.multi_reduction <maximumf>, %124, %cst_39 [1, 2, 3] : vector<1x8x8x8xf32> to vector<1xf32>
    %126 = vector.shape_cast %125 : vector<1xf32> to vector<1x1x1x1xf32>
    %127 = vector.extract %126[0, 0, 0, 0] : f32 from vector<1x1x1x1xf32>
    %cst_40 = arith.constant 0.000000e+00 : f32
    %128 = arith.maximumf %127, %cst_40 : f32
    %129 = arith.subf %128, %123 : f32
    %cst_41 = arith.constant 2.550000e+02 : f32
    %130 = arith.divf %129, %cst_41 : f32
    %cst_42 = arith.constant 1.1920929E-7 : f32
    %131 = arith.maximumf %130, %cst_42 : f32
    %cst_43 = arith.constant 1.000000e+00 : f32
    %132 = arith.divf %cst_43, %131 : f32
    %133 = arith.mulf %123, %132 : f32
    %cst_44 = arith.constant 0.000000e+00 : f32
    %134 = arith.subf %cst_44, %133 : f32
    %135 = math.roundeven %134 : f32
    %cst_45 = arith.constant 0.000000e+00 : f32
    %cst_46 = arith.constant 2.550000e+02 : f32
    %136 = arith.maximumf %cst_45, %135 : f32
    %137 = arith.minimumf %cst_46, %136 : f32
    %138 = vector.broadcast %132 : f32 to vector<8x8x8xf32>
    %139 = arith.mulf %118, %138 : vector<8x8x8xf32>
    %140 = vector.broadcast %137 : f32 to vector<8x8x8xf32>
    %141 = arith.addf %139, %140 : vector<8x8x8xf32>
    %142 = math.roundeven %141 : vector<8x8x8xf32>
    %cst_47 = arith.constant 0.000000e+00 : f32
    %cst_48 = arith.constant 2.550000e+02 : f32
    %143 = vector.broadcast %cst_47 : f32 to vector<8x8x8xf32>
    %144 = arith.maximumf %143, %142 : vector<8x8x8xf32>
    %145 = vector.broadcast %cst_48 : f32 to vector<8x8x8xf32>
    %146 = arith.minimumf %145, %144 : vector<8x8x8xf32>
    %147 = vector.broadcast %137 : f32 to vector<8x8x8xf32>
    %148 = arith.subf %146, %147 : vector<8x8x8xf32>
    %149 = vector.broadcast %131 : f32 to vector<8x8x8xf32>
    %150 = arith.mulf %148, %149 : vector<8x8x8xf32>
    %151 = vector.shape_cast %150 : vector<8x8x8xf32> to vector<4x16x8xf32>
    %152 = vector.extract_strided_slice %151 {offsets = [0, 0, 0], sizes = [1, 16, 8], strides = [1, 1, 1]} : vector<4x16x8xf32> to vector<1x16x8xf32>
    %153 = vector.shape_cast %152 : vector<1x16x8xf32> to vector<16x8xf32>
    %154 = vector.extract_strided_slice %151 {offsets = [1, 0, 0], sizes = [1, 16, 8], strides = [1, 1, 1]} : vector<4x16x8xf32> to vector<1x16x8xf32>
    %155 = vector.shape_cast %154 : vector<1x16x8xf32> to vector<16x8xf32>
    %156 = vector.extract_strided_slice %151 {offsets = [2, 0, 0], sizes = [1, 16, 8], strides = [1, 1, 1]} : vector<4x16x8xf32> to vector<1x16x8xf32>
    %157 = vector.shape_cast %156 : vector<1x16x8xf32> to vector<16x8xf32>
    %158 = vector.extract_strided_slice %151 {offsets = [3, 0, 0], sizes = [1, 16, 8], strides = [1, 1, 1]} : vector<4x16x8xf32> to vector<1x16x8xf32>
    %159 = vector.shape_cast %158 : vector<1x16x8xf32> to vector<16x8xf32>
    %160 = tpu.concatenate %153, %155, %157, %159 in 1 : vector<16x8xf32>, vector<16x8xf32>, vector<16x8xf32>, vector<16x8xf32> -> vector<16x32xf32>
    %c0_49 = arith.constant 0 : index
    %c0_50 = arith.constant 0 : index
    %161 = vector.load %arg4[%c0_49, %c0_50] : memref<16x32xf32, #tpu.memory_space<vmem>>, vector<16x32xf32>
    tpu.vector_store %arg4[%c0_49, %c0_50], %160 {strides = array<i32>} : memref<16x32xf32, #tpu.memory_space<vmem>>, vector<16x32xf32>,
    return
  }
}

</mosaic_0001>

<llo_original>
// kernel: qaware_bert_self_attention.1
$region0: #{qaware_bert_self_attention.1}
  #allocation0 [shape = 'u32[]', space=smem, size = 0x4, offset = 0x4, fixed_abs, tag = 'smem constant byte address 0x4 - core index']
  #allocation1 [shape = 'u32[144,128]{1,0:T(1,128)}', space=vmem, size = 0x12000, scoped, tag = 'internal scratch']
  %s0 = inlined_call_operand.vmem [shape: f32[16,32], index: 0, kind: input, shape index: {}]
  %s1 = inlined_call_operand.vmem [shape: f32[32,96], index: 1, kind: input, shape index: {}]
  %s2 = inlined_call_operand.vmem [shape: f32[1,96], index: 2, kind: input, shape index: {}]
  %s3 = inlined_call_operand.vmem [shape: f32[8,8,8], index: 3, kind: input, shape index: {}]
  %s4 = inlined_call_operand.hbm [shape: f32[16,32], index: 4, kind: output, shape index: {}]
  %s5 = sld [smem:[#allocation0]]
  $region26: #{qaware_bert_self_attention.1} parent=0
    _
  %s7 = ssub.s32 1, %s5
  %s8 = scalar_select 0, %s7, %s5
  $region1: #{qaware_bert_self_attention.1} parent=0
    #allocation2 [shape = 'u8[8192]{0}', space=vmem, size = 0x2000, scoped, tag = 'output window, operand 0, single buffered']
    #allocation3 [shape = 's32[1]{0}', space=sflag, size = 0x4, scoped, tag = 'scoped memory for qaware_bert_self_attention.1']
    %9 = vsyncpa [#allocation3], 0
    // Predicated region
    $region2: #{qaware_bert_self_attention.1} parent=1 // pred_check
      _
    $region3: #{qaware_bert_self_attention.1} parent=1 // pred_check_branch
      %11 = sbr.rel (0) target = $region5
    $region4: #{qaware_bert_self_attention.1} parent=1 // pred_region
      _
    $region5: #{qaware_bert_self_attention.1} parent=1 // pred_fallthru
      _
    // Predicated region
    $region6: #{qaware_bert_self_attention.1} parent=1 // pred_check
      _
    $region7: #{qaware_bert_self_attention.1} parent=1 // pred_check_branch
      %13 = sbr.rel (0) target = $region9
    $region8: #{qaware_bert_self_attention.1} parent=1 // pred_region
      _
    $region9: #{qaware_bert_self_attention.1} parent=1 // pred_fallthru
      _
    // Predicated region
    $region10: #{qaware_bert_self_attention.1} parent=1 // pred_check
      _
    $region11: #{qaware_bert_self_attention.1} parent=1 // pred_check_branch
      %15 = sbr.rel (0) target = $region13
    $region12: #{qaware_bert_self_attention.1} parent=1 // pred_region
      _
    $region13: #{qaware_bert_self_attention.1} parent=1 // pred_fallthru
      _
    // Predicated region
    $region14: #{qaware_bert_self_attention.1} parent=1 // pred_check
      _
    $region15: #{qaware_bert_self_attention.1} parent=1 // pred_check_branch
      %17 = sbr.rel (0) target = $region17
    $region16: #{qaware_bert_self_attention.1} parent=1 // pred_region
      _
    $region17: #{qaware_bert_self_attention.1} parent=1 // pred_fallthru
      _
    %v18 = vld [vmem:[%s0] sm:$0xff]
    %v19 = vld [vmem:[%s0 + $0x8] sm:$0xff]
    %v20 = vld [vmem:[%s1] sm:$0xff]
    %v21 = vld [vmem:[%s1 + $0x8] sm:$0xff]
    %v22 = vld [vmem:[%s1 + $0x10] sm:$0xff]
    %v23 = vld [vmem:[%s1 + $0x18] sm:$0xff]
    %v24 = vld [vmem:[%s2] sm:$0x1]
    %v26 = vlaneseq
    %v27 = vshrl.u32 %v26, 7
    %v28 = vsub.s32 0, %v27
    %v29 = vrot.slane %v24, %v28
    %vm31 = vcmask 261120
    %v33 = vsel %vm31, %v18, 0
    %v36 = vsel %vm31, %v19, 0
    %38 = vmatprep.subr.mxu0 0.0
    %39 = vmatpush1.msra.mxu0 %v20
    %40 = vmatprep.subr.mxu0 0.0
    %41 = vmatpush1.msra.mxu0 %v21
    %42 = vmatprep.subr.mxu0 0.0
    %43 = vmatpush1.msra.mxu0 %v22
    %44 = vmatprep.subr.mxu0 0.0
    %45 = vmatpush1.msra.mxu0 %v23
    %46 = vmatprep.subr.mxu0 0.0
    %47 = vmatpush1.msra.mxu0 0.0
    %48 = vmatprep.subr.mxu0 0.0
    %49 = vmatpush1.msra.mxu0 0.0
    %50 = vmatprep.subr.mxu0 0.0
    %51 = vmatpush1.msra.mxu0 0.0
    %52 = vmatprep.subr.mxu0 0.0
    %53 = vmatpush1.msra.mxu0 0.0
    %54 = vmatprep.subr.mxu0 0.0
    %55 = vmatpush1.msra.mxu0 0.0
    %56 = vmatprep.subr.mxu0 0.0
    %57 = vmatpush1.msra.mxu0 0.0
    %58 = vmatprep.subr.mxu0 0.0
    %59 = vmatpush1.msra.mxu0 0.0
    %60 = vmatprep.subr.mxu0 0.0
    %61 = vmatpush1.msra.mxu0 0.0
    %62 = vmatprep.subr.mxu0 0.0
    %63 = vmatpush1.msra.mxu0 0.0
    %64 = vmatprep.subr.mxu0 0.0
    %65 = vmatpush1.msra.mxu0 0.0
    %66 = vmatprep.subr.mxu0 0.0
    %67 = vmatpush1.msra.mxu0 0.0
    %68 = vmatprep.subr.mxu0 0.0
    %69 = vmatpush1.msra.mxu0 0.0
    %70 = vmatprep.subr.mxu0 0.0
    %71 = vmatpush1.msra.mxu0 0.0
    %72 = vmatprep.subr.mxu0 0.0
    %73 = vmatpush1.msra.mxu0 0.0
    %74 = vmatprep.subr.mxu0 0.0
    %75 = vmatpush1.msra.mxu0 0.0
    %76 = vmatprep.subr.mxu0 0.0
    %77 = vmatpush1.msra.mxu0 0.0
    %78 = vmatprep.subr.mxu0 0.0
    %79 = vmatpush1.msra.mxu0 0.0
    %80 = vmatprep.subr.mxu0 0.0
    %81 = vmatpush1.msra.mxu0 0.0
    %82 = vmatprep.subr.mxu0 0.0
    %83 = vmatpush1.msra.mxu0 0.0
    %84 = vmatprep.subr.mxu0 0.0
    %85 = vmatpush1.msra.mxu0 0.0
    %86 = vmatprep.subr.mxu0 0.0
    %87 = vmatpush1.msra.mxu0 0.0
    %88 = vmatprep.subr.mxu0 0.0
    %89 = vmatpush1.msra.mxu0 0.0
    %90 = vmatprep.subr.mxu0 0.0
    %91 = vmatpush1.msra.mxu0 0.0
    %92 = vmatprep.subr.mxu0 0.0
    %93 = vmatpush1.msra.mxu0 0.0
    %94 = vmatprep.subr.mxu0 0.0
    %95 = vmatpush1.msra.mxu0 0.0
    %96 = vmatprep.subr.mxu0 0.0
    %97 = vmatpush1.msra.mxu0 0.0
    %98 = vmatprep.subr.mxu0 0.0
    %99 = vmatpush1.msra.mxu0 0.0
    %100 = vmatprep.subr.mxu0 0.0
    %101 = vmatpush1.msra.mxu0 0.0
    %102 = vmatprep.mubr.f32.mxu0 0.0
    %103 = vmatmul.mubr.f32.gmra.mrb[0].mxu0 %v33
    %v104 = vpop.f32.mrb[0].mxu0
    %v105 = vadd.f32 %v29, %v104
    %v106 = vpop.f32.mrb[0].mxu0
    %107 = vmatprep.mubr.f32.mxu0 0.0
    %108 = vmatmul.mubr.f32.gmra.mrb[0].mxu0 %v36
    %v109 = vpop.f32.mrb[0].mxu0
    %v110 = vadd.f32 %v29, %v109
    %v111 = vpop.f32.mrb[0].mxu0
    %112 = vdwg.mxu0
    %115 = vrot.lane.b32.xlu0 %v105, 120
    %v116 = vpop.permute.xlu0 %115
    %117 = vrot.lane.b32.xlu0 %v110, 120
    %v118 = vpop.permute.xlu0 %117
    %119 = vrot.lane.b32.xlu0 %v105, 112
    %v120 = vpop.permute.xlu0 %119
    %121 = vrot.lane.b32.xlu0 %v110, 112
    %v122 = vpop.permute.xlu0 %121
    %123 = vrot.lane.b32.xlu0 %v105, 104
    %v124 = vpop.permute.xlu0 %123
    %125 = vrot.lane.b32.xlu0 %v110, 104
    %v126 = vpop.permute.xlu0 %125
    %127 = vrot.lane.b32.xlu0 %v105, 96
    %v128 = vpop.permute.xlu0 %127
    %vm129 = vcmask 64512
    %v130 = vsel %vm129, %v105, 0
    %v132 = vsel %vm129, %v128, 0
    %134 = vmatprep.subr.mxu0 0.0
    %135 = vmatpush1.xpose.msra.mxu0 %v132
    %136 = vmatprep.subr.mxu0 0.0
    %137 = vmatpush1.xpose.msra.mxu0 0.0
    %138 = vmatprep.subr.mxu0 0.0
    %139 = vmatpush1.xpose.msra.mxu0 0.0
    %140 = vmatprep.subr.mxu0 0.0
    %141 = vmatpush1.xpose.msra.mxu0 0.0
    %142 = vmatprep.subr.mxu0 0.0
    %143 = vmatpush1.xpose.msra.mxu0 0.0
    %144 = vmatprep.subr.mxu0 0.0
    %145 = vmatpush1.xpose.msra.mxu0 0.0
    %146 = vmatprep.subr.mxu0 0.0
    %147 = vmatpush1.xpose.msra.mxu0 0.0
    %148 = vmatprep.subr.mxu0 0.0
    %149 = vmatpush1.xpose.msra.mxu0 0.0
    %150 = vmatprep.subr.mxu0 0.0
    %151 = vmatpush1.xpose.msra.mxu0 0.0
    %152 = vmatprep.subr.mxu0 0.0
    %153 = vmatpush1.xpose.msra.mxu0 0.0
    %154 = vmatprep.subr.mxu0 0.0
    %155 = vmatpush1.xpose.msra.mxu0 0.0
    %156 = vmatprep.subr.mxu0 0.0
    %157 = vmatpush1.xpose.msra.mxu0 0.0
    %158 = vmatprep.subr.mxu0 0.0
    %159 = vmatpush1.xpose.msra.mxu0 0.0
    %160 = vmatprep.subr.mxu0 0.0
    %161 = vmatpush1.xpose.msra.mxu0 0.0
    %162 = vmatprep.subr.mxu0 0.0
    %163 = vmatpush1.xpose.msra.mxu0 0.0
    %164 = vmatprep.subr.mxu0 0.0
    %165 = vmatpush1.xpose.msra.mxu0 0.0
    %166 = vmatprep.subr.mxu0 0.0
    %167 = vmatpush1.xpose.msra.mxu0 0.0
    %168 = vmatprep.subr.mxu0 0.0
    %169 = vmatpush1.xpose.msra.mxu0 0.0
    %170 = vmatprep.subr.mxu0 0.0
    %171 = vmatpush1.xpose.msra.mxu0 0.0
    %172 = vmatprep.subr.mxu0 0.0
    %173 = vmatpush1.xpose.msra.mxu0 0.0
    %174 = vmatprep.subr.mxu0 0.0
    %175 = vmatpush1.xpose.msra.mxu0 0.0
    %176 = vmatprep.subr.mxu0 0.0
    %177 = vmatpush1.xpose.msra.mxu0 0.0
    %178 = vmatprep.subr.mxu0 0.0
    %179 = vmatpush1.xpose.msra.mxu0 0.0
    %180 = vmatprep.subr.mxu0 0.0
    %181 = vmatpush1.xpose.msra.mxu0 0.0
    %182 = vmatprep.subr.mxu0 0.0
    %183 = vmatpush1.xpose.msra.mxu0 0.0
    %184 = vmatprep.subr.mxu0 0.0
    %185 = vmatpush1.xpose.msra.mxu0 0.0
    %186 = vmatprep.subr.mxu0 0.0
    %187 = vmatpush1.xpose.msra.mxu0 0.0
    %188 = vmatprep.subr.mxu0 0.0
    %189 = vmatpush1.xpose.msra.mxu0 0.0
    %190 = vmatprep.subr.mxu0 0.0
    %191 = vmatpush1.xpose.msra.mxu0 0.0
    %192 = vmatprep.subr.mxu0 0.0
    %193 = vmatpush1.xpose.msra.mxu0 0.0
    %194 = vmatprep.subr.mxu0 0.0
    %195 = vmatpush1.xpose.msra.mxu0 0.0
    %196 = vmatprep.subr.mxu0 0.0
    %197 = vmatpush1.xpose.msra.mxu0 0.0
    %198 = vmatprep.mubr.f32.mxu0 0.0
    %199 = vmatmul.mubr.f32.gmra.mrb[0].mxu0 %v130
    %v200 = vpop.f32.mrb[0].mxu0
    %v201 = vadd.f32 0.0, %v200
    %v202 = vpop.f32.mrb[0].mxu0
    %203 = vdwg.mxu0
    %204 = vrot.lane.b32.xlu0 %v110, 96
    %v205 = vpop.permute.xlu0 %204
    %v206 = vsel %vm129, %v110, 0
    %v208 = vsel %vm129, %v205, 0
    %210 = vmatprep.subr.mxu0 0.0
    %211 = vmatpush1.xpose.msra.mxu0 %v208
    %212 = vmatprep.subr.mxu0 0.0
    %213 = vmatpush1.xpose.msra.mxu0 0.0
    %214 = vmatprep.subr.mxu0 0.0
    %215 = vmatpush1.xpose.msra.mxu0 0.0
    %216 = vmatprep.subr.mxu0 0.0
    %217 = vmatpush1.xpose.msra.mxu0 0.0
    %218 = vmatprep.subr.mxu0 0.0
    %219 = vmatpush1.xpose.msra.mxu0 0.0
    %220 = vmatprep.subr.mxu0 0.0
    %221 = vmatpush1.xpose.msra.mxu0 0.0
    %222 = vmatprep.subr.mxu0 0.0
    %223 = vmatpush1.xpose.msra.mxu0 0.0
    %224 = vmatprep.subr.mxu0 0.0
    %225 = vmatpush1.xpose.msra.mxu0 0.0
    %226 = vmatprep.subr.mxu0 0.0
    %227 = vmatpush1.xpose.msra.mxu0 0.0
    %228 = vmatprep.subr.mxu0 0.0
    %229 = vmatpush1.xpose.msra.mxu0 0.0
    %230 = vmatprep.subr.mxu0 0.0
    %231 = vmatpush1.xpose.msra.mxu0 0.0
    %232 = vmatprep.subr.mxu0 0.0
    %233 = vmatpush1.xpose.msra.mxu0 0.0
    %234 = vmatprep.subr.mxu0 0.0
    %235 = vmatpush1.xpose.msra.mxu0 0.0
    %236 = vmatprep.subr.mxu0 0.0
    %237 = vmatpush1.xpose.msra.mxu0 0.0
    %238 = vmatprep.subr.mxu0 0.0
    %239 = vmatpush1.xpose.msra.mxu0 0.0
    %240 = vmatprep.subr.mxu0 0.0
    %241 = vmatpush1.xpose.msra.mxu0 0.0
    %242 = vmatprep.subr.mxu0 0.0
    %243 = vmatpush1.xpose.msra.mxu0 0.0
    %244 = vmatprep.subr.mxu0 0.0
    %245 = vmatpush1.xpose.msra.mxu0 0.0
    %246 = vmatprep.subr.mxu0 0.0
    %247 = vmatpush1.xpose.msra.mxu0 0.0
    %248 = vmatprep.subr.mxu0 0.0
    %249 = vmatpush1.xpose.msra.mxu0 0.0
    %250 = vmatprep.subr.mxu0 0.0
    %251 = vmatpush1.xpose.msra.mxu0 0.0
    %252 = vmatprep.subr.mxu0 0.0
    %253 = vmatpush1.xpose.msra.mxu0 0.0
    %254 = vmatprep.subr.mxu0 0.0
    %255 = vmatpush1.xpose.msra.mxu0 0.0
    %256 = vmatprep.subr.mxu0 0.0
    %257 = vmatpush1.xpose.msra.mxu0 0.0
    %258 = vmatprep.subr.mxu0 0.0
    %259 = vmatpush1.xpose.msra.mxu0 0.0
    %260 = vmatprep.subr.mxu0 0.0
    %261 = vmatpush1.xpose.msra.mxu0 0.0
    %262 = vmatprep.subr.mxu0 0.0
    %263 = vmatpush1.xpose.msra.mxu0 0.0
    %264 = vmatprep.subr.mxu0 0.0
    %265 = vmatpush1.xpose.msra.mxu0 0.0
    %266 = vmatprep.subr.mxu0 0.0
    %267 = vmatpush1.xpose.msra.mxu0 0.0
    %268 = vmatprep.subr.mxu0 0.0
    %269 = vmatpush1.xpose.msra.mxu0 0.0
    %270 = vmatprep.subr.mxu0 0.0
    %271 = vmatpush1.xpose.msra.mxu0 0.0
    %272 = vmatprep.subr.mxu0 0.0
    %273 = vmatpush1.xpose.msra.mxu0 0.0
    %274 = vmatprep.mubr.f32.mxu0 0.0
    %275 = vmatmul.mubr.f32.gmra.mrb[0].mxu0 %v206
    %v276 = vpop.f32.mrb[0].mxu0
    %v277 = vadd.f32 0.0, %v276
    %v278 = vpop.f32.mrb[0].mxu0
    %279 = vdwg.mxu0
    %280 = vrot.lane.b32.xlu0 %v116, 96
    %v281 = vpop.permute.xlu0 %280
    %v282 = vsel %vm129, %v116, 0
    %v284 = vsel %vm129, %v281, 0
    %286 = vmatprep.subr.mxu0 0.0
    %287 = vmatpush1.xpose.msra.mxu0 %v284
    %288 = vmatprep.subr.mxu0 0.0
    %289 = vmatpush1.xpose.msra.mxu0 0.0
    %290 = vmatprep.subr.mxu0 0.0
    %291 = vmatpush1.xpose.msra.mxu0 0.0
    %292 = vmatprep.subr.mxu0 0.0
    %293 = vmatpush1.xpose.msra.mxu0 0.0
    %294 = vmatprep.subr.mxu0 0.0
    %295 = vmatpush1.xpose.msra.mxu0 0.0
    %296 = vmatprep.subr.mxu0 0.0
    %297 = vmatpush1.xpose.msra.mxu0 0.0
    %298 = vmatprep.subr.mxu0 0.0
    %299 = vmatpush1.xpose.msra.mxu0 0.0
    %300 = vmatprep.subr.mxu0 0.0
    %301 = vmatpush1.xpose.msra.mxu0 0.0
    %302 = vmatprep.subr.mxu0 0.0
    %303 = vmatpush1.xpose.msra.mxu0 0.0
    %304 = vmatprep.subr.mxu0 0.0
    %305 = vmatpush1.xpose.msra.mxu0 0.0
    %306 = vmatprep.subr.mxu0 0.0
    %307 = vmatpush1.xpose.msra.mxu0 0.0
    %308 = vmatprep.subr.mxu0 0.0
    %309 = vmatpush1.xpose.msra.mxu0 0.0
    %310 = vmatprep.subr.mxu0 0.0
    %311 = vmatpush1.xpose.msra.mxu0 0.0
    %312 = vmatprep.subr.mxu0 0.0
    %313 = vmatpush1.xpose.msra.mxu0 0.0
    %314 = vmatprep.subr.mxu0 0.0
    %315 = vmatpush1.xpose.msra.mxu0 0.0
    %316 = vmatprep.subr.mxu0 0.0
    %317 = vmatpush1.xpose.msra.mxu0 0.0
    %318 = vmatprep.subr.mxu0 0.0
    %319 = vmatpush1.xpose.msra.mxu0 0.0
    %320 = vmatprep.subr.mxu0 0.0
    %321 = vmatpush1.xpose.msra.mxu0 0.0
    %322 = vmatprep.subr.mxu0 0.0
    %323 = vmatpush1.xpose.msra.mxu0 0.0
    %324 = vmatprep.subr.mxu0 0.0
    %325 = vmatpush1.xpose.msra.mxu0 0.0
    %326 = vmatprep.subr.mxu0 0.0
    %327 = vmatpush1.xpose.msra.mxu0 0.0
    %328 = vmatprep.subr.mxu0 0.0
    %329 = vmatpush1.xpose.msra.mxu0 0.0
    %330 = vmatprep.subr.mxu0 0.0
    %331 = vmatpush1.xpose.msra.mxu0 0.0
    %332 = vmatprep.subr.mxu0 0.0
    %333 = vmatpush1.xpose.msra.mxu0 0.0
    %334 = vmatprep.subr.mxu0 0.0
    %335 = vmatpush1.xpose.msra.mxu0 0.0
    %336 = vmatprep.subr.mxu0 0.0
    %337 = vmatpush1.xpose.msra.mxu0 0.0
    %338 = vmatprep.subr.mxu0 0.0
    %339 = vmatpush1.xpose.msra.mxu0 0.0
    %340 = vmatprep.subr.mxu0 0.0
    %341 = vmatpush1.xpose.msra.mxu0 0.0
    %342 = vmatprep.subr.mxu0 0.0
    %343 = vmatpush1.xpose.msra.mxu0 0.0
    %344 = vmatprep.subr.mxu0 0.0
    %345 = vmatpush1.xpose.msra.mxu0 0.0
    %346 = vmatprep.subr.mxu0 0.0
    %347 = vmatpush1.xpose.msra.mxu0 0.0
    %348 = vmatprep.subr.mxu0 0.0
    %349 = vmatpush1.xpose.msra.mxu0 0.0
    %350 = vmatprep.mubr.f32.mxu0 0.0
    %351 = vmatmul.mubr.f32.gmra.mrb[0].mxu0 %v282
    %v352 = vpop.f32.mrb[0].mxu0
    %v353 = vadd.f32 0.0, %v352
    %v354 = vpop.f32.mrb[0].mxu0
    %355 = vdwg.mxu0
    %356 = vrot.lane.b32.xlu0 %v118, 96
    %v357 = vpop.permute.xlu0 %356
    %v358 = vsel %vm129, %v118, 0
    %v360 = vsel %vm129, %v357, 0
    %362 = vmatprep.subr.mxu0 0.0
    %363 = vmatpush1.xpose.msra.mxu0 %v360
    %364 = vmatprep.subr.mxu0 0.0
    %365 = vmatpush1.xpose.msra.mxu0 0.0
    %366 = vmatprep.subr.mxu0 0.0
    %367 = vmatpush1.xpose.msra.mxu0 0.0
    %368 = vmatprep.subr.mxu0 0.0
    %369 = vmatpush1.xpose.msra.mxu0 0.0
    %370 = vmatprep.subr.mxu0 0.0
    %371 = vmatpush1.xpose.msra.mxu0 0.0
    %372 = vmatprep.subr.mxu0 0.0
    %373 = vmatpush1.xpose.msra.mxu0 0.0
    %374 = vmatprep.subr.mxu0 0.0
    %375 = vmatpush1.xpose.msra.mxu0 0.0
    %376 = vmatprep.subr.mxu0 0.0
    %377 = vmatpush1.xpose.msra.mxu0 0.0
    %378 = vmatprep.subr.mxu0 0.0
    %379 = vmatpush1.xpose.msra.mxu0 0.0
    %380 = vmatprep.subr.mxu0 0.0
    %381 = vmatpush1.xpose.msra.mxu0 0.0
    %382 = vmatprep.subr.mxu0 0.0
    %383 = vmatpush1.xpose.msra.mxu0 0.0
    %384 = vmatprep.subr.mxu0 0.0
    %385 = vmatpush1.xpose.msra.mxu0 0.0
    %386 = vmatprep.subr.mxu0 0.0
    %387 = vmatpush1.xpose.msra.mxu0 0.0
    %388 = vmatprep.subr.mxu0 0.0
    %389 = vmatpush1.xpose.msra.mxu0 0.0
    %390 = vmatprep.subr.mxu0 0.0
    %391 = vmatpush1.xpose.msra.mxu0 0.0
    %392 = vmatprep.subr.mxu0 0.0
    %393 = vmatpush1.xpose.msra.mxu0 0.0
    %394 = vmatprep.subr.mxu0 0.0
    %395 = vmatpush1.xpose.msra.mxu0 0.0
    %396 = vmatprep.subr.mxu0 0.0
    %397 = vmatpush1.xpose.msra.mxu0 0.0
    %398 = vmatprep.subr.mxu0 0.0
    %399 = vmatpush1.xpose.msra.mxu0 0.0
    %400 = vmatprep.subr.mxu0 0.0
    %401 = vmatpush1.xpose.msra.mxu0 0.0
    %402 = vmatprep.subr.mxu0 0.0
    %403 = vmatpush1.xpose.msra.mxu0 0.0
    %404 = vmatprep.subr.mxu0 0.0
    %405 = vmatpush1.xpose.msra.mxu0 0.0
    %406 = vmatprep.subr.mxu0 0.0
    %407 = vmatpush1.xpose.msra.mxu0 0.0
    %408 = vmatprep.subr.mxu0 0.0
    %409 = vmatpush1.xpose.msra.mxu0 0.0
    %410 = vmatprep.subr.mxu0 0.0
    %411 = vmatpush1.xpose.msra.mxu0 0.0
    %412 = vmatprep.subr.mxu0 0.0
    %413 = vmatpush1.xpose.msra.mxu0 0.0
    %414 = vmatprep.subr.mxu0 0.0
    %415 = vmatpush1.xpose.msra.mxu0 0.0
    %416 = vmatprep.subr.mxu0 0.0
    %417 = vmatpush1.xpose.msra.mxu0 0.0
    %418 = vmatprep.subr.mxu0 0.0
    %419 = vmatpush1.xpose.msra.mxu0 0.0
    %420 = vmatprep.subr.mxu0 0.0
    %421 = vmatpush1.xpose.msra.mxu0 0.0
    %422 = vmatprep.subr.mxu0 0.0
    %423 = vmatpush1.xpose.msra.mxu0 0.0
    %424 = vmatprep.subr.mxu0 0.0
    %425 = vmatpush1.xpose.msra.mxu0 0.0
    %426 = vmatprep.mubr.f32.mxu0 0.0
    %427 = vmatmul.mubr.f32.gmra.mrb[0].mxu0 %v358
    %v428 = vpop.f32.mrb[0].mxu0
    %v429 = vadd.f32 0.0, %v428
    %v430 = vpop.f32.mrb[0].mxu0
    %431 = vdwg.mxu0
    %432 = vrot.lane.b32.xlu0 %v120, 96
    %v433 = vpop.permute.xlu0 %432
    %v434 = vsel %vm129, %v120, 0
    %v436 = vsel %vm129, %v433, 0
    %438 = vmatprep.subr.mxu0 0.0
    %439 = vmatpush1.xpose.msra.mxu0 %v436
    %440 = vmatprep.subr.mxu0 0.0
    %441 = vmatpush1.xpose.msra.mxu0 0.0
    %442 = vmatprep.subr.mxu0 0.0
    %443 = vmatpush1.xpose.msra.mxu0 0.0
    %444 = vmatprep.subr.mxu0 0.0
    %445 = vmatpush1.xpose.msra.mxu0 0.0
    %446 = vmatprep.subr.mxu0 0.0
    %447 = vmatpush1.xpose.msra.mxu0 0.0
    %448 = vmatprep.subr.mxu0 0.0
    %449 = vmatpush1.xpose.msra.mxu0 0.0
    %450 = vmatprep.subr.mxu0 0.0
    %451 = vmatpush1.xpose.msra.mxu0 0.0
    %452 = vmatprep.subr.mxu0 0.0
    %453 = vmatpush1.xpose.msra.mxu0 0.0
    %454 = vmatprep.subr.mxu0 0.0
    %455 = vmatpush1.xpose.msra.mxu0 0.0
    %456 = vmatprep.subr.mxu0 0.0
    %457 = vmatpush1.xpose.msra.mxu0 0.0
    %458 = vmatprep.subr.mxu0 0.0
    %459 = vmatpush1.xpose.msra.mxu0 0.0
    %460 = vmatprep.subr.mxu0 0.0
    %461 = vmatpush1.xpose.msra.mxu0 0.0
    %462 = vmatprep.subr.mxu0 0.0
    %463 = vmatpush1.xpose.msra.mxu0 0.0
    %464 = vmatprep.subr.mxu0 0.0
    %465 = vmatpush1.xpose.msra.mxu0 0.0
    %466 = vmatprep.subr.mxu0 0.0
    %467 = vmatpush1.xpose.msra.mxu0 0.0
    %468 = vmatprep.subr.mxu0 0.0
    %469 = vmatpush1.xpose.msra.mxu0 0.0
    %470 = vmatprep.subr.mxu0 0.0
    %471 = vmatpush1.xpose.msra.mxu0 0.0
    %472 = vmatprep.subr.mxu0 0.0
    %473 = vmatpush1.xpose.msra.mxu0 0.0
    %474 = vmatprep.subr.mxu0 0.0
    %475 = vmatpush1.xpose.msra.mxu0 0.0
    %476 = vmatprep.subr.mxu0 0.0
    %477 = vmatpush1.xpose.msra.mxu0 0.0
    %478 = vmatprep.subr.mxu0 0.0
    %479 = vmatpush1.xpose.msra.mxu0 0.0
    %480 = vmatprep.subr.mxu0 0.0
    %481 = vmatpush1.xpose.msra.mxu0 0.0
    %482 = vmatprep.subr.mxu0 0.0
    %483 = vmatpush1.xpose.msra.mxu0 0.0
    %484 = vmatprep.subr.mxu0 0.0
    %485 = vmatpush1.xpose.msra.mxu0 0.0
    %486 = vmatprep.subr.mxu0 0.0
    %487 = vmatpush1.xpose.msra.mxu0 0.0
    %488 = vmatprep.subr.mxu0 0.0
    %489 = vmatpush1.xpose.msra.mxu0 0.0
    %490 = vmatprep.subr.mxu0 0.0
    %491 = vmatpush1.xpose.msra.mxu0 0.0
    %492 = vmatprep.subr.mxu0 0.0
    %493 = vmatpush1.xpose.msra.mxu0 0.0
    %494 = vmatprep.subr.mxu0 0.0
    %495 = vmatpush1.xpose.msra.mxu0 0.0
    %496 = vmatprep.subr.mxu0 0.0
    %497 = vmatpush1.xpose.msra.mxu0 0.0
    %498 = vmatprep.subr.mxu0 0.0
    %499 = vmatpush1.xpose.msra.mxu0 0.0
    %500 = vmatprep.subr.mxu0 0.0
    %501 = vmatpush1.xpose.msra.mxu0 0.0
    %502 = vmatprep.mubr.f32.mxu0 0.0
    %503 = vmatmul.mubr.f32.gmra.mrb[0].mxu0 %v434
    %v504 = vpop.f32.mrb[0].mxu0
    %v505 = vadd.f32 0.0, %v504
    %v506 = vpop.f32.mrb[0].mxu0
    %507 = vdwg.mxu0
    %508 = vrot.lane.b32.xlu0 %v122, 96
    %v509 = vpop.permute.xlu0 %508
    %v510 = vsel %vm129, %v122, 0
    %v512 = vsel %vm129, %v509, 0
    %514 = vmatprep.subr.mxu0 0.0
    %515 = vmatpush1.xpose.msra.mxu0 %v512
    %516 = vmatprep.subr.mxu0 0.0
    %517 = vmatpush1.xpose.msra.mxu0 0.0
    %518 = vmatprep.subr.mxu0 0.0
    %519 = vmatpush1.xpose.msra.mxu0 0.0
    %520 = vmatprep.subr.mxu0 0.0
    %521 = vmatpush1.xpose.msra.mxu0 0.0
    %522 = vmatprep.subr.mxu0 0.0
    %523 = vmatpush1.xpose.msra.mxu0 0.0
    %524 = vmatprep.subr.mxu0 0.0
    %525 = vmatpush1.xpose.msra.mxu0 0.0
    %526 = vmatprep.subr.mxu0 0.0
    %527 = vmatpush1.xpose.msra.mxu0 0.0
    %528 = vmatprep.subr.mxu0 0.0
    %529 = vmatpush1.xpose.msra.mxu0 0.0
    %530 = vmatprep.subr.mxu0 0.0
    %531 = vmatpush1.xpose.msra.mxu0 0.0
    %532 = vmatprep.subr.mxu0 0.0
    %533 = vmatpush1.xpose.msra.mxu0 0.0
    %534 = vmatprep.subr.mxu0 0.0
    %535 = vmatpush1.xpose.msra.mxu0 0.0
    %536 = vmatprep.subr.mxu0 0.0
    %537 = vmatpush1.xpose.msra.mxu0 0.0
    %538 = vmatprep.subr.mxu0 0.0
    %539 = vmatpush1.xpose.msra.mxu0 0.0
    %540 = vmatprep.subr.mxu0 0.0
    %541 = vmatpush1.xpose.msra.mxu0 0.0
    %542 = vmatprep.subr.mxu0 0.0
    %543 = vmatpush1.xpose.msra.mxu0 0.0
    %544 = vmatprep.subr.mxu0 0.0
    %545 = vmatpush1.xpose.msra.mxu0 0.0
    %546 = vmatprep.subr.mxu0 0.0
    %547 = vmatpush1.xpose.msra.mxu0 0.0
    %548 = vmatprep.subr.mxu0 0.0
    %549 = vmatpush1.xpose.msra.mxu0 0.0
    %550 = vmatprep.subr.mxu0 0.0
    %551 = vmatpush1.xpose.msra.mxu0 0.0
    %552 = vmatprep.subr.mxu0 0.0
    %553 = vmatpush1.xpose.msra.mxu0 0.0
    %554 = vmatprep.subr.mxu0 0.0
    %555 = vmatpush1.xpose.msra.mxu0 0.0
    %556 = vmatprep.subr.mxu0 0.0
    %557 = vmatpush1.xpose.msra.mxu0 0.0
    %558 = vmatprep.subr.mxu0 0.0
    %559 = vmatpush1.xpose.msra.mxu0 0.0
    %560 = vmatprep.subr.mxu0 0.0
    %561 = vmatpush1.xpose.msra.mxu0 0.0
    %562 = vmatprep.subr.mxu0 0.0
    %563 = vmatpush1.xpose.msra.mxu0 0.0
    %564 = vmatprep.subr.mxu0 0.0
    %565 = vmatpush1.xpose.msra.mxu0 0.0
    %566 = vmatprep.subr.mxu0 0.0
    %567 = vmatpush1.xpose.msra.mxu0 0.0
    %568 = vmatprep.subr.mxu0 0.0
    %569 = vmatpush1.xpose.msra.mxu0 0.0
    %570 = vmatprep.subr.mxu0 0.0
    %571 = vmatpush1.xpose.msra.mxu0 0.0
    %572 = vmatprep.subr.mxu0 0.0
    %573 = vmatpush1.xpose.msra.mxu0 0.0
    %574 = vmatprep.subr.mxu0 0.0
    %575 = vmatpush1.xpose.msra.mxu0 0.0
    %576 = vmatprep.subr.mxu0 0.0
    %577 = vmatpush1.xpose.msra.mxu0 0.0
    %578 = vmatprep.mubr.f32.mxu0 0.0
    %579 = vmatmul.mubr.f32.gmra.mrb[0].mxu0 %v510
    %v580 = vpop.f32.mrb[0].mxu0
    %v581 = vadd.f32 0.0, %v580
    %v582 = vpop.f32.mrb[0].mxu0
    %583 = vdwg.mxu0
    %584 = vrot.lane.b32.xlu0 %v124, 96
    %v585 = vpop.permute.xlu0 %584
    %v586 = vsel %vm129, %v124, 0
    %v588 = vsel %vm129, %v585, 0
    %590 = vmatprep.subr.mxu0 0.0
    %591 = vmatpush1.xpose.msra.mxu0 %v588
    %592 = vmatprep.subr.mxu0 0.0
    %593 = vmatpush1.xpose.msra.mxu0 0.0
    %594 = vmatprep.subr.mxu0 0.0
    %595 = vmatpush1.xpose.msra.mxu0 0.0
    %596 = vmatprep.subr.mxu0 0.0
    %597 = vmatpush1.xpose.msra.mxu0 0.0
    %598 = vmatprep.subr.mxu0 0.0
    %599 = vmatpush1.xpose.msra.mxu0 0.0
    %600 = vmatprep.subr.mxu0 0.0
    %601 = vmatpush1.xpose.msra.mxu0 0.0
    %602 = vmatprep.subr.mxu0 0.0
    %603 = vmatpush1.xpose.msra.mxu0 0.0
    %604 = vmatprep.subr.mxu0 0.0
    %605 = vmatpush1.xpose.msra.mxu0 0.0
    %606 = vmatprep.subr.mxu0 0.0
    %607 = vmatpush1.xpose.msra.mxu0 0.0
    %608 = vmatprep.subr.mxu0 0.0
    %609 = vmatpush1.xpose.msra.mxu0 0.0
    %610 = vmatprep.subr.mxu0 0.0
    %611 = vmatpush1.xpose.msra.mxu0 0.0
    %612 = vmatprep.subr.mxu0 0.0
    %613 = vmatpush1.xpose.msra.mxu0 0.0
    %614 = vmatprep.subr.mxu0 0.0
    %615 = vmatpush1.xpose.msra.mxu0 0.0
    %616 = vmatprep.subr.mxu0 0.0
    %617 = vmatpush1.xpose.msra.mxu0 0.0
    %618 = vmatprep.subr.mxu0 0.0
    %619 = vmatpush1.xpose.msra.mxu0 0.0
    %620 = vmatprep.subr.mxu0 0.0
    %621 = vmatpush1.xpose.msra.mxu0 0.0
    %622 = vmatprep.subr.mxu0 0.0
    %623 = vmatpush1.xpose.msra.mxu0 0.0
    %624 = vmatprep.subr.mxu0 0.0
    %625 = vmatpush1.xpose.msra.mxu0 0.0
    %626 = vmatprep.subr.mxu0 0.0
    %627 = vmatpush1.xpose.msra.mxu0 0.0
    %628 = vmatprep.subr.mxu0 0.0
    %629 = vmatpush1.xpose.msra.mxu0 0.0
    %630 = vmatprep.subr.mxu0 0.0
    %631 = vmatpush1.xpose.msra.mxu0 0.0
    %632 = vmatprep.subr.mxu0 0.0
    %633 = vmatpush1.xpose.msra.mxu0 0.0
    %634 = vmatprep.subr.mxu0 0.0
    %635 = vmatpush1.xpose.msra.mxu0 0.0
    %636 = vmatprep.subr.mxu0 0.0
    %637 = vmatpush1.xpose.msra.mxu0 0.0
    %638 = vmatprep.subr.mxu0 0.0
    %639 = vmatpush1.xpose.msra.mxu0 0.0
    %640 = vmatprep.subr.mxu0 0.0
    %641 = vmatpush1.xpose.msra.mxu0 0.0
    %642 = vmatprep.subr.mxu0 0.0
    %643 = vmatpush1.xpose.msra.mxu0 0.0
    %644 = vmatprep.subr.mxu0 0.0
    %645 = vmatpush1.xpose.msra.mxu0 0.0
    %646 = vmatprep.subr.mxu0 0.0
    %647 = vmatpush1.xpose.msra.mxu0 0.0
    %648 = vmatprep.subr.mxu0 0.0
    %649 = vmatpush1.xpose.msra.mxu0 0.0
    %650 = vmatprep.subr.mxu0 0.0
    %651 = vmatpush1.xpose.msra.mxu0 0.0
    %652 = vmatprep.subr.mxu0 0.0
    %653 = vmatpush1.xpose.msra.mxu0 0.0
    %654 = vmatprep.mubr.f32.mxu0 0.0
    %655 = vmatmul.mubr.f32.gmra.mrb[0].mxu0 %v586
    %v656 = vpop.f32.mrb[0].mxu0
    %v657 = vadd.f32 0.0, %v656
    %v658 = vpop.f32.mrb[0].mxu0
    %659 = vdwg.mxu0
    %660 = vrot.lane.b32.xlu0 %v126, 96
    %v661 = vpop.permute.xlu0 %660
    %v662 = vsel %vm129, %v126, 0
    %v664 = vsel %vm129, %v661, 0
    %666 = vmatprep.subr.mxu0 0.0
    %667 = vmatpush1.xpose.msra.mxu0 %v664
    %668 = vmatprep.subr.mxu0 0.0
    %669 = vmatpush1.xpose.msra.mxu0 0.0
    %670 = vmatprep.subr.mxu0 0.0
    %671 = vmatpush1.xpose.msra.mxu0 0.0
    %672 = vmatprep.subr.mxu0 0.0
    %673 = vmatpush1.xpose.msra.mxu0 0.0
    %674 = vmatprep.subr.mxu0 0.0
    %675 = vmatpush1.xpose.msra.mxu0 0.0
    %676 = vmatprep.subr.mxu0 0.0
    %677 = vmatpush1.xpose.msra.mxu0 0.0
    %678 = vmatprep.subr.mxu0 0.0
    %679 = vmatpush1.xpose.msra.mxu0 0.0
    %680 = vmatprep.subr.mxu0 0.0
    %681 = vmatpush1.xpose.msra.mxu0 0.0
    %682 = vmatprep.subr.mxu0 0.0
    %683 = vmatpush1.xpose.msra.mxu0 0.0
    %684 = vmatprep.subr.mxu0 0.0
    %685 = vmatpush1.xpose.msra.mxu0 0.0
    %686 = vmatprep.subr.mxu0 0.0
    %687 = vmatpush1.xpose.msra.mxu0 0.0
    %688 = vmatprep.subr.mxu0 0.0
    %689 = vmatpush1.xpose.msra.mxu0 0.0
    %690 = vmatprep.subr.mxu0 0.0
    %691 = vmatpush1.xpose.msra.mxu0 0.0
    %692 = vmatprep.subr.mxu0 0.0
    %693 = vmatpush1.xpose.msra.mxu0 0.0
    %694 = vmatprep.subr.mxu0 0.0
    %695 = vmatpush1.xpose.msra.mxu0 0.0
    %696 = vmatprep.subr.mxu0 0.0
    %697 = vmatpush1.xpose.msra.mxu0 0.0
    %698 = vmatprep.subr.mxu0 0.0
    %699 = vmatpush1.xpose.msra.mxu0 0.0
    %700 = vmatprep.subr.mxu0 0.0
    %701 = vmatpush1.xpose.msra.mxu0 0.0
    %702 = vmatprep.subr.mxu0 0.0
    %703 = vmatpush1.xpose.msra.mxu0 0.0
    %704 = vmatprep.subr.mxu0 0.0
    %705 = vmatpush1.xpose.msra.mxu0 0.0
    %706 = vmatprep.subr.mxu0 0.0
    %707 = vmatpush1.xpose.msra.mxu0 0.0
    %708 = vmatprep.subr.mxu0 0.0
    %709 = vmatpush1.xpose.msra.mxu0 0.0
    %710 = vmatprep.subr.mxu0 0.0
    %711 = vmatpush1.xpose.msra.mxu0 0.0
    %712 = vmatprep.subr.mxu0 0.0
    %713 = vmatpush1.xpose.msra.mxu0 0.0
    %714 = vmatprep.subr.mxu0 0.0
    %715 = vmatpush1.xpose.msra.mxu0 0.0
    %716 = vmatprep.subr.mxu0 0.0
    %717 = vmatpush1.xpose.msra.mxu0 0.0
    %718 = vmatprep.subr.mxu0 0.0
    %719 = vmatpush1.xpose.msra.mxu0 0.0
    %720 = vmatprep.subr.mxu0 0.0
    %721 = vmatpush1.xpose.msra.mxu0 0.0
    %722 = vmatprep.subr.mxu0 0.0
    %723 = vmatpush1.xpose.msra.mxu0 0.0
    %724 = vmatprep.subr.mxu0 0.0
    %725 = vmatpush1.xpose.msra.mxu0 0.0
    %726 = vmatprep.subr.mxu0 0.0
    %727 = vmatpush1.xpose.msra.mxu0 0.0
    %728 = vmatprep.subr.mxu0 0.0
    %729 = vmatpush1.xpose.msra.mxu0 0.0
    %730 = vmatprep.mubr.f32.mxu0 0.0
    %731 = vmatmul.mubr.f32.gmra.mrb[0].mxu0 %v662
    %v732 = vpop.f32.mrb[0].mxu0
    %v733 = vadd.f32 0.0, %v732
    %v734 = vpop.f32.mrb[0].mxu0
    %735 = vdwg.mxu0
    %v736 = vsel %vm129, %v201, inf
    %v737 = vsel %vm129, %v277, inf
    %v738 = vsel %vm129, %v353, inf
    %v739 = vsel %vm129, %v429, inf
    %v740 = vsel %vm129, %v505, inf
    %v741 = vmin.f32 %v736, %v740
    %v742 = vsel %vm129, %v581, inf
    %v743 = vmin.f32 %v737, %v742
    %v744 = vsel %vm129, %v657, inf
    %v745 = vmin.f32 %v738, %v744
    %v746 = vsel %vm129, %v733, inf
    %v747 = vmin.f32 %v739, %v746
    %v748 = vmin.f32 %v741, %v743
    %v749 = vmin.f32 %v745, %v747
    %v750 = vmin.f32 %v748, %v749
    %751 = vmin.xlane.f32.xlu0 %v750
    %v752 = vpop.xlane.xlu0 %751
    %v753 = vrot.slane %v752, 4
    %v754 = vmin.f32 %v752, %v753
    %v755 = vrot.slane %v754, 2
    %v756 = vmin.f32 %v754, %v755
    %v757 = vrot.slane %v756, 1
    %v758 = vmin.f32 %v756, %v757
    %s759 = vtos %v758
    %s760 = smin.f32 %s759, 0.0
    %v761 = vsel %vm129, %v201, -inf
    %v762 = vsel %vm129, %v277, -inf
    %v763 = vsel %vm129, %v353, -inf
    %v764 = vsel %vm129, %v429, -inf
    %v765 = vsel %vm129, %v505, -inf
    %v766 = vmax.f32 %v761, %v765
    %v767 = vsel %vm129, %v581, -inf
    %v768 = vmax.f32 %v762, %v767
    %v769 = vsel %vm129, %v657, -inf
    %v770 = vmax.f32 %v763, %v769
    %v771 = vsel %vm129, %v733, -inf
    %v772 = vmax.f32 %v764, %v771
    %v773 = vmax.f32 %v766, %v768
    %v774 = vmax.f32 %v770, %v772
    %v775 = vmax.f32 %v773, %v774
    %776 = vmax.xlane.f32.xlu0 %v775
    %v777 = vpop.xlane.xlu0 %776
    %v778 = vrot.slane %v777, 4
    %v779 = vmax.f32 %v777, %v778
    %v780 = vrot.slane %v779, 2
    %v781 = vmax.f32 %v779, %v780
    %v782 = vrot.slane %v781, 1
    %v783 = vmax.f32 %v781, %v782
    %s784 = vtos %v783
    %s785 = smax.f32 %s784, 0.0
    %s786 = ssub.f32 %s785, %s760
    %v787 = vrcp.pop 255.0
    %s788 = vtos %v787
    %s789 = smul.f32 %s786, %s788
    %s790 = smax.f32 %s789, 1.1920929e-07
    %v791 = vstv %s790
    %v792 = vrcp.pop %v791
    %s793 = vtos %v792
    %s794 = smul.f32 %s760, %s793
    %s795 = ssub.f32 0.0, %s794
    %s796 = scvt.f32.s32 %s795
    %s797 = scvt.s32.f32 %s796
    %s798 = sand.u32 2147483647, %s797
    %s799 = sand.u32 %s795, 2147483648
    %s800 = sor.u32 %s798, %s799
    %s801 = sand.u32 2147483647, %s795
    %p802 = scmp.lt.f32.partialorder %s801, 2.1474836e+09
    %s803 = scalar_select %p802, %s800, %s795
    %s804 = smax.f32 %s803, 0.0
    %s805 = smin.f32 %s804, 255.0
    %v806 = vstv %s793
    %v807 = vmul.f32 %v201, %v806
    %v808 = vmul.f32 %v277, %v806
    %v809 = vmul.f32 %v353, %v806
    %v810 = vmul.f32 %v429, %v806
    %v811 = vmul.f32 %v505, %v806
    %v812 = vmul.f32 %v581, %v806
    %v813 = vmul.f32 %v657, %v806
    %v814 = vmul.f32 %v733, %v806
    %v815 = vstv %s805
    %v816 = vadd.f32 %v807, %v815
    %v817 = vadd.f32 %v808, %v815
    %v818 = vadd.f32 %v809, %v815
    %v819 = vadd.f32 %v810, %v815
    %v820 = vadd.f32 %v811, %v815
    %v821 = vadd.f32 %v812, %v815
    %v822 = vadd.f32 %v813, %v815
    %v823 = vadd.f32 %v814, %v815
    %v824 = vround.ne.pseudo %v816
    %v825 = vround.ne.pseudo %v817
    %v826 = vround.ne.pseudo %v818
    %v827 = vround.ne.pseudo %v819
    %v828 = vround.ne.pseudo %v820
    %v829 = vround.ne.pseudo %v821
    %v830 = vround.ne.pseudo %v822
    %v831 = vround.ne.pseudo %v823
    %v832 = vmax.f32 %v824, 0.0
    %v833 = vmax.f32 %v825, 0.0
    %v834 = vmax.f32 %v826, 0.0
    %v835 = vmax.f32 %v827, 0.0
    %v836 = vmax.f32 %v828, 0.0
    %v837 = vmax.f32 %v829, 0.0
    %v838 = vmax.f32 %v830, 0.0
    %v839 = vmax.f32 %v831, 0.0
    %v840 = vmin.f32 %v832, 255.0
    %v841 = vmin.f32 %v833, 255.0
    %v842 = vmin.f32 %v834, 255.0
    %v843 = vmin.f32 %v835, 255.0
    %v844 = vmin.f32 %v836, 255.0
    %v845 = vmin.f32 %v837, 255.0
    %v846 = vmin.f32 %v838, 255.0
    %v847 = vmin.f32 %v839, 255.0
    %v848 = vsub.f32 %v840, %v815
    %v849 = vsub.f32 %v841, %v815
    %v850 = vsub.f32 %v842, %v815
    %v851 = vsub.f32 %v843, %v815
    %v852 = vsub.f32 %v844, %v815
    %v853 = vsub.f32 %v845, %v815
    %v854 = vsub.f32 %v846, %v815
    %v855 = vsub.f32 %v847, %v815
    %v856 = vstv %s790
    %v857 = vmul.f32 %v848, %v856
    %v858 = vmul.f32 %v849, %v856
    %v859 = vmul.f32 %v850, %v856
    %v860 = vmul.f32 %v851, %v856
    %v861 = vmul.f32 %v852, %v856
    %v862 = vmul.f32 %v853, %v856
    %v863 = vmul.f32 %v854, %v856
    %v864 = vmul.f32 %v855, %v856
    %v865 = vmul.f32 %v857, 0.35355338
    %v866 = vmul.f32 %v858, 0.35355338
    %v867 = vmul.f32 %v859, 0.35355338
    %v868 = vmul.f32 %v860, 0.35355338
    %v869 = vmul.f32 %v861, 0.35355338
    %v870 = vmul.f32 %v862, 0.35355338
    %v871 = vmul.f32 %v863, 0.35355338
    %v872 = vmul.f32 %v864, 0.35355338
    %v873 = vld [vmem:[%s3] sm:$0xff]
    %v874 = vld [vmem:[%s3 + $0x8] sm:$0xff]
    %v875 = vld [vmem:[%s3 + $0x10] sm:$0xff]
    %v876 = vld [vmem:[%s3 + $0x18] sm:$0xff]
    %v877 = vld [vmem:[%s3 + $0x20] sm:$0xff]
    %v878 = vld [vmem:[%s3 + $0x28] sm:$0xff]
    %v879 = vld [vmem:[%s3 + $0x30] sm:$0xff]
    %v880 = vld [vmem:[%s3 + $0x38] sm:$0xff]
    %v881 = vadd.f32 %v865, %v873
    %v882 = vadd.f32 %v866, %v874
    %v883 = vadd.f32 %v867, %v875
    %v884 = vadd.f32 %v868, %v876
    %v885 = vadd.f32 %v869, %v877
    %v886 = vadd.f32 %v870, %v878
    %v887 = vadd.f32 %v871, %v879
    %v888 = vadd.f32 %v872, %v880
    %v889 = vsel %vm129, %v881, -inf
    %890 = vmax.xlane.f32.xlu0 %v889
    %v891 = vpop.xlane.xlu0 %890
    %v892 = vsel %vm129, %v882, -inf
    %893 = vmax.xlane.f32.xlu0 %v892
    %v894 = vpop.xlane.xlu0 %893
    %v895 = vsel %vm129, %v883, -inf
    %896 = vmax.xlane.f32.xlu0 %v895
    %v897 = vpop.xlane.xlu0 %896
    %v898 = vsel %vm129, %v884, -inf
    %899 = vmax.xlane.f32.xlu0 %v898
    %v900 = vpop.xlane.xlu0 %899
    %v901 = vsel %vm129, %v885, -inf
    %902 = vmax.xlane.f32.xlu0 %v901
    %v903 = vpop.xlane.xlu0 %902
    %v904 = vsel %vm129, %v886, -inf
    %905 = vmax.xlane.f32.xlu0 %v904
    %v906 = vpop.xlane.xlu0 %905
    %v907 = vsel %vm129, %v887, -inf
    %908 = vmax.xlane.f32.xlu0 %v907
    %v909 = vpop.xlane.xlu0 %908
    %v910 = vsel %vm129, %v888, -inf
    %911 = vmax.xlane.f32.xlu0 %v910
    %v912 = vpop.xlane.xlu0 %911
    %v913 = vsub.f32 %v881, %v891
    %v914 = vsub.f32 %v882, %v894
    %v915 = vsub.f32 %v883, %v897
    %v916 = vsub.f32 %v884, %v900
    %v917 = vsub.f32 %v885, %v903
    %v918 = vsub.f32 %v886, %v906
    %v919 = vsub.f32 %v887, %v909
    %v920 = vsub.f32 %v888, %v912
    %v921 = vmul.f32 %v913, 1.442695
    %v922 = vpow.pop %v921
    %v923 = vmul.f32 %v914, 1.442695
    %v924 = vpow.pop %v923
    %v925 = vmul.f32 %v915, 1.442695
    %v926 = vpow.pop %v925
    %v927 = vmul.f32 %v916, 1.442695
    %v928 = vpow.pop %v927
    %v929 = vmul.f32 %v917, 1.442695
    %v930 = vpow.pop %v929
    %v931 = vmul.f32 %v918, 1.442695
    %v932 = vpow.pop %v931
    %v933 = vmul.f32 %v919, 1.442695
    %v934 = vpow.pop %v933
    %v935 = vmul.f32 %v920, 1.442695
    %v936 = vpow.pop %v935
    %v937 = vsel %vm129, %v922, 0.0
    %938 = vadd.xlane.f32.xlu0 %v937
    %v939 = vpop.xlane.xlu0 %938
    %v940 = vsel %vm129, %v924, 0.0
    %941 = vadd.xlane.f32.xlu0 %v940
    %v942 = vpop.xlane.xlu0 %941
    %v943 = vsel %vm129, %v926, 0.0
    %944 = vadd.xlane.f32.xlu0 %v943
    %v945 = vpop.xlane.xlu0 %944
    %v946 = vsel %vm129, %v928, 0.0
    %947 = vadd.xlane.f32.xlu0 %v946
    %v948 = vpop.xlane.xlu0 %947
    %v949 = vsel %vm129, %v930, 0.0
    %950 = vadd.xlane.f32.xlu0 %v949
    %v951 = vpop.xlane.xlu0 %950
    %v952 = vsel %vm129, %v932, 0.0
    %953 = vadd.xlane.f32.xlu0 %v952
    %v954 = vpop.xlane.xlu0 %953
    %v955 = vsel %vm129, %v934, 0.0
    %956 = vadd.xlane.f32.xlu0 %v955
    %v957 = vpop.xlane.xlu0 %956
    %v958 = vsel %vm129, %v936, 0.0
    %959 = vadd.xlane.f32.xlu0 %v958
    %v960 = vpop.xlane.xlu0 %959
    %v961 = vrcp.pop %v939
    %v962 = vrcp.pop %v942
    %v963 = vrcp.pop %v945
    %v964 = vrcp.pop %v948
    %v965 = vrcp.pop %v951
    %v966 = vrcp.pop %v954
    %v967 = vrcp.pop %v957
    %v968 = vrcp.pop %v960
    %v969 = vmul.f32 %v922, %v961
    %v970 = vmul.f32 %v924, %v962
    %v971 = vmul.f32 %v926, %v963
    %v972 = vmul.f32 %v928, %v964
    %v973 = vmul.f32 %v930, %v965
    %v974 = vmul.f32 %v932, %v966
    %v975 = vmul.f32 %v934, %v967
    %v976 = vmul.f32 %v936, %v968
    %v977 = vsel %vm129, %v969, inf
    %v978 = vsel %vm129, %v970, inf
    %v979 = vsel %vm129, %v971, inf
    %v980 = vsel %vm129, %v972, inf
    %v981 = vsel %vm129, %v973, inf
    %v982 = vmin.f32 %v977, %v981
    %v983 = vsel %vm129, %v974, inf
    %v984 = vmin.f32 %v978, %v983
    %v985 = vsel %vm129, %v975, inf
    %v986 = vmin.f32 %v979, %v985
    %v987 = vsel %vm129, %v976, inf
    %v988 = vmin.f32 %v980, %v987
    %v989 = vmin.f32 %v982, %v984
    %v990 = vmin.f32 %v986, %v988
    %v991 = vmin.f32 %v989, %v990
    %992 = vmin.xlane.f32.xlu0 %v991
    %v993 = vpop.xlane.xlu0 %992
    %v994 = vrot.slane %v993, 4
    %v995 = vmin.f32 %v993, %v994
    %v996 = vrot.slane %v995, 2
    %v997 = vmin.f32 %v995, %v996
    %v998 = vrot.slane %v997, 1
    %v999 = vmin.f32 %v997, %v998
    %s1000 = vtos %v999
    %s1001 = smin.f32 %s1000, 0.0
    %v1002 = vsel %vm129, %v969, -inf
    %v1003 = vsel %vm129, %v970, -inf
    %v1004 = vsel %vm129, %v971, -inf
    %v1005 = vsel %vm129, %v972, -inf
    %v1006 = vsel %vm129, %v973, -inf
    %v1007 = vmax.f32 %v1002, %v1006
    %v1008 = vsel %vm129, %v974, -inf
    %v1009 = vmax.f32 %v1003, %v1008
    %v1010 = vsel %vm129, %v975, -inf
    %v1011 = vmax.f32 %v1004, %v1010
    %v1012 = vsel %vm129, %v976, -inf
    %v1013 = vmax.f32 %v1005, %v1012
    %v1014 = vmax.f32 %v1007, %v1009
    %v1015 = vmax.f32 %v1011, %v1013
    %v1016 = vmax.f32 %v1014, %v1015
    %1017 = vmax.xlane.f32.xlu0 %v1016
    %v1018 = vpop.xlane.xlu0 %1017
    %v1019 = vrot.slane %v1018, 4
    %v1020 = vmax.f32 %v1018, %v1019
    %v1021 = vrot.slane %v1020, 2
    %v1022 = vmax.f32 %v1020, %v1021
    %v1023 = vrot.slane %v1022, 1
    %v1024 = vmax.f32 %v1022, %v1023
    %s1025 = vtos %v1024
    %s1026 = smax.f32 %s1025, 0.0
    %s1027 = ssub.f32 %s1026, %s1001
    %v1028 = vrcp.pop 255.0
    %s1029 = vtos %v1028
    %s1030 = smul.f32 %s1027, %s1029
    %s1031 = smax.f32 %s1030, 1.1920929e-07
    %v1032 = vstv %s1031
    %v1033 = vrcp.pop %v1032
    %s1034 = vtos %v1033
    %s1035 = smul.f32 %s1001, %s1034
    %s1036 = ssub.f32 0.0, %s1035
    %s1037 = scvt.f32.s32 %s1036
    %s1038 = scvt.s32.f32 %s1037
    %s1039 = sand.u32 2147483647, %s1038
    %s1040 = sand.u32 %s1036, 2147483648
    %s1041 = sor.u32 %s1039, %s1040
    %s1042 = sand.u32 2147483647, %s1036
    %p1043 = scmp.lt.f32.partialorder %s1042, 2.1474836e+09
    %s1044 = scalar_select %p1043, %s1041, %s1036
    %s1045 = smax.f32 %s1044, 0.0
    %s1046 = smin.f32 %s1045, 255.0
    %v1047 = vstv %s1034
    %v1048 = vmul.f32 %v969, %v1047
    %v1049 = vmul.f32 %v970, %v1047
    %v1050 = vmul.f32 %v971, %v1047
    %v1051 = vmul.f32 %v972, %v1047
    %v1052 = vmul.f32 %v973, %v1047
    %v1053 = vmul.f32 %v974, %v1047
    %v1054 = vmul.f32 %v975, %v1047
    %v1055 = vmul.f32 %v976, %v1047
    %v1056 = vstv %s1046
    %v1057 = vadd.f32 %v1048, %v1056
    %v1058 = vadd.f32 %v1049, %v1056
    %v1059 = vadd.f32 %v1050, %v1056
    %v1060 = vadd.f32 %v1051, %v1056
    %v1061 = vadd.f32 %v1052, %v1056
    %v1062 = vadd.f32 %v1053, %v1056
    %v1063 = vadd.f32 %v1054, %v1056
    %v1064 = vadd.f32 %v1055, %v1056
    %v1065 = vround.ne.pseudo %v1057
    %v1066 = vround.ne.pseudo %v1058
    %v1067 = vround.ne.pseudo %v1059
    %v1068 = vround.ne.pseudo %v1060
    %v1069 = vround.ne.pseudo %v1061
    %v1070 = vround.ne.pseudo %v1062
    %v1071 = vround.ne.pseudo %v1063
    %v1072 = vround.ne.pseudo %v1064
    %v1073 = vmax.f32 %v1065, 0.0
    %v1074 = vmax.f32 %v1066, 0.0
    %v1075 = vmax.f32 %v1067, 0.0
    %v1076 = vmax.f32 %v1068, 0.0
    %v1077 = vmax.f32 %v1069, 0.0
    %v1078 = vmax.f32 %v1070, 0.0
    %v1079 = vmax.f32 %v1071, 0.0
    %v1080 = vmax.f32 %v1072, 0.0
    %v1081 = vmin.f32 %v1073, 255.0
    %v1082 = vmin.f32 %v1074, 255.0
    %v1083 = vmin.f32 %v1075, 255.0
    %v1084 = vmin.f32 %v1076, 255.0
    %v1085 = vmin.f32 %v1077, 255.0
    %v1086 = vmin.f32 %v1078, 255.0
    %v1087 = vmin.f32 %v1079, 255.0
    %v1088 = vmin.f32 %v1080, 255.0
    %v1089 = vsub.f32 %v1081, %v1056
    %v1090 = vsub.f32 %v1082, %v1056
    %v1091 = vsub.f32 %v1083, %v1056
    %v1092 = vsub.f32 %v1084, %v1056
    %v1093 = vsub.f32 %v1085, %v1056
    %v1094 = vsub.f32 %v1086, %v1056
    %v1095 = vsub.f32 %v1087, %v1056
    %v1096 = vsub.f32 %v1088, %v1056
    %v1097 = vstv %s1031
    %v1098 = vmul.f32 %v1089, %v1097
    %v1099 = vmul.f32 %v1090, %v1097
    %v1100 = vmul.f32 %v1091, %v1097
    %v1101 = vmul.f32 %v1092, %v1097
    %v1102 = vmul.f32 %v1093, %v1097
    %v1103 = vmul.f32 %v1094, %v1097
    %v1104 = vmul.f32 %v1095, %v1097
    %v1105 = vmul.f32 %v1096, %v1097
    %1106 = vrot.lane.b32.xlu0 %v105, 64
    %v1107 = vpop.permute.xlu0 %1106
    %v1110 = vsel %vm129, %v1098, 0
    %1112 = vmatprep.subr.mxu0 0.0
    %1113 = vmatpush1.msra.mxu0 %v1107
    %1114 = vmatprep.subr.mxu0 0.0
    %1115 = vmatpush1.msra.mxu0 0.0
    %1116 = vmatprep.subr.mxu0 0.0
    %1117 = vmatpush1.msra.mxu0 0.0
    %1118 = vmatprep.subr.mxu0 0.0
    %1119 = vmatpush1.msra.mxu0 0.0
    %1120 = vmatprep.subr.mxu0 0.0
    %1121 = vmatpush1.msra.mxu0 0.0
    %1122 = vmatprep.subr.mxu0 0.0
    %1123 = vmatpush1.msra.mxu0 0.0
    %1124 = vmatprep.subr.mxu0 0.0
    %1125 = vmatpush1.msra.mxu0 0.0
    %1126 = vmatprep.subr.mxu0 0.0
    %1127 = vmatpush1.msra.mxu0 0.0
    %1128 = vmatprep.subr.mxu0 0.0
    %1129 = vmatpush1.msra.mxu0 0.0
    %1130 = vmatprep.subr.mxu0 0.0
    %1131 = vmatpush1.msra.mxu0 0.0
    %1132 = vmatprep.subr.mxu0 0.0
    %1133 = vmatpush1.msra.mxu0 0.0
    %1134 = vmatprep.subr.mxu0 0.0
    %1135 = vmatpush1.msra.mxu0 0.0
    %1136 = vmatprep.subr.mxu0 0.0
    %1137 = vmatpush1.msra.mxu0 0.0
    %1138 = vmatprep.subr.mxu0 0.0
    %1139 = vmatpush1.msra.mxu0 0.0
    %1140 = vmatprep.subr.mxu0 0.0
    %1141 = vmatpush1.msra.mxu0 0.0
    %1142 = vmatprep.subr.mxu0 0.0
    %1143 = vmatpush1.msra.mxu0 0.0
    %1144 = vmatprep.subr.mxu0 0.0
    %1145 = vmatpush1.msra.mxu0 0.0
    %1146 = vmatprep.subr.mxu0 0.0
    %1147 = vmatpush1.msra.mxu0 0.0
    %1148 = vmatprep.subr.mxu0 0.0
    %1149 = vmatpush1.msra.mxu0 0.0
    %1150 = vmatprep.subr.mxu0 0.0
    %1151 = vmatpush1.msra.mxu0 0.0
    %1152 = vmatprep.subr.mxu0 0.0
    %1153 = vmatpush1.msra.mxu0 0.0
    %1154 = vmatprep.subr.mxu0 0.0
    %1155 = vmatpush1.msra.mxu0 0.0
    %1156 = vmatprep.subr.mxu0 0.0
    %1157 = vmatpush1.msra.mxu0 0.0
    %1158 = vmatprep.subr.mxu0 0.0
    %1159 = vmatpush1.msra.mxu0 0.0
    %1160 = vmatprep.subr.mxu0 0.0
    %1161 = vmatpush1.msra.mxu0 0.0
    %1162 = vmatprep.subr.mxu0 0.0
    %1163 = vmatpush1.msra.mxu0 0.0
    %1164 = vmatprep.subr.mxu0 0.0
    %1165 = vmatpush1.msra.mxu0 0.0
    %1166 = vmatprep.subr.mxu0 0.0
    %1167 = vmatpush1.msra.mxu0 0.0
    %1168 = vmatprep.subr.mxu0 0.0
    %1169 = vmatpush1.msra.mxu0 0.0
    %1170 = vmatprep.subr.mxu0 0.0
    %1171 = vmatpush1.msra.mxu0 0.0
    %1172 = vmatprep.subr.mxu0 0.0
    %1173 = vmatpush1.msra.mxu0 0.0
    %1174 = vmatprep.subr.mxu0 0.0
    %1175 = vmatpush1.msra.mxu0 0.0
    %1176 = vmatprep.mubr.f32.mxu0 0.0
    %1177 = vmatmul.mubr.f32.gmra.mrb[0].mxu0 %v1110
    %v1178 = vpop.f32.mrb[0].mxu0
    %v1179 = vadd.f32 0.0, %v1178
    %v1180 = vpop.f32.mrb[0].mxu0
    %1181 = vdwg.mxu0
    %1182 = vrot.lane.b32.xlu0 %v110, 64
    %v1183 = vpop.permute.xlu0 %1182
    %v1186 = vsel %vm129, %v1099, 0
    %1188 = vmatprep.subr.mxu0 0.0
    %1189 = vmatpush1.msra.mxu0 %v1183
    %1190 = vmatprep.subr.mxu0 0.0
    %1191 = vmatpush1.msra.mxu0 0.0
    %1192 = vmatprep.subr.mxu0 0.0
    %1193 = vmatpush1.msra.mxu0 0.0
    %1194 = vmatprep.subr.mxu0 0.0
    %1195 = vmatpush1.msra.mxu0 0.0
    %1196 = vmatprep.subr.mxu0 0.0
    %1197 = vmatpush1.msra.mxu0 0.0
    %1198 = vmatprep.subr.mxu0 0.0
    %1199 = vmatpush1.msra.mxu0 0.0
    %1200 = vmatprep.subr.mxu0 0.0
    %1201 = vmatpush1.msra.mxu0 0.0
    %1202 = vmatprep.subr.mxu0 0.0
    %1203 = vmatpush1.msra.mxu0 0.0
    %1204 = vmatprep.subr.mxu0 0.0
    %1205 = vmatpush1.msra.mxu0 0.0
    %1206 = vmatprep.subr.mxu0 0.0
    %1207 = vmatpush1.msra.mxu0 0.0
    %1208 = vmatprep.subr.mxu0 0.0
    %1209 = vmatpush1.msra.mxu0 0.0
    %1210 = vmatprep.subr.mxu0 0.0
    %1211 = vmatpush1.msra.mxu0 0.0
    %1212 = vmatprep.subr.mxu0 0.0
    %1213 = vmatpush1.msra.mxu0 0.0
    %1214 = vmatprep.subr.mxu0 0.0
    %1215 = vmatpush1.msra.mxu0 0.0
    %1216 = vmatprep.subr.mxu0 0.0
    %1217 = vmatpush1.msra.mxu0 0.0
    %1218 = vmatprep.subr.mxu0 0.0
    %1219 = vmatpush1.msra.mxu0 0.0
    %1220 = vmatprep.subr.mxu0 0.0
    %1221 = vmatpush1.msra.mxu0 0.0
    %1222 = vmatprep.subr.mxu0 0.0
    %1223 = vmatpush1.msra.mxu0 0.0
    %1224 = vmatprep.subr.mxu0 0.0
    %1225 = vmatpush1.msra.mxu0 0.0
    %1226 = vmatprep.subr.mxu0 0.0
    %1227 = vmatpush1.msra.mxu0 0.0
    %1228 = vmatprep.subr.mxu0 0.0
    %1229 = vmatpush1.msra.mxu0 0.0
    %1230 = vmatprep.subr.mxu0 0.0
    %1231 = vmatpush1.msra.mxu0 0.0
    %1232 = vmatprep.subr.mxu0 0.0
    %1233 = vmatpush1.msra.mxu0 0.0
    %1234 = vmatprep.subr.mxu0 0.0
    %1235 = vmatpush1.msra.mxu0 0.0
    %1236 = vmatprep.subr.mxu0 0.0
    %1237 = vmatpush1.msra.mxu0 0.0
    %1238 = vmatprep.subr.mxu0 0.0
    %1239 = vmatpush1.msra.mxu0 0.0
    %1240 = vmatprep.subr.mxu0 0.0
    %1241 = vmatpush1.msra.mxu0 0.0
    %1242 = vmatprep.subr.mxu0 0.0
    %1243 = vmatpush1.msra.mxu0 0.0
    %1244 = vmatprep.subr.mxu0 0.0
    %1245 = vmatpush1.msra.mxu0 0.0
    %1246 = vmatprep.subr.mxu0 0.0
    %1247 = vmatpush1.msra.mxu0 0.0
    %1248 = vmatprep.subr.mxu0 0.0
    %1249 = vmatpush1.msra.mxu0 0.0
    %1250 = vmatprep.subr.mxu0 0.0
    %1251 = vmatpush1.msra.mxu0 0.0
    %1252 = vmatprep.mubr.f32.mxu0 0.0
    %1253 = vmatmul.mubr.f32.gmra.mrb[0].mxu0 %v1186
    %v1254 = vpop.f32.mrb[0].mxu0
    %v1255 = vadd.f32 0.0, %v1254
    %v1256 = vpop.f32.mrb[0].mxu0
    %1257 = vdwg.mxu0
    %1258 = vrot.lane.b32.xlu0 %v116, 64
    %v1259 = vpop.permute.xlu0 %1258
    %v1262 = vsel %vm129, %v1100, 0
    %1264 = vmatprep.subr.mxu0 0.0
    %1265 = vmatpush1.msra.mxu0 %v1259
    %1266 = vmatprep.subr.mxu0 0.0
    %1267 = vmatpush1.msra.mxu0 0.0
    %1268 = vmatprep.subr.mxu0 0.0
    %1269 = vmatpush1.msra.mxu0 0.0
    %1270 = vmatprep.subr.mxu0 0.0
    %1271 = vmatpush1.msra.mxu0 0.0
    %1272 = vmatprep.subr.mxu0 0.0
    %1273 = vmatpush1.msra.mxu0 0.0
    %1274 = vmatprep.subr.mxu0 0.0
    %1275 = vmatpush1.msra.mxu0 0.0
    %1276 = vmatprep.subr.mxu0 0.0
    %1277 = vmatpush1.msra.mxu0 0.0
    %1278 = vmatprep.subr.mxu0 0.0
    %1279 = vmatpush1.msra.mxu0 0.0
    %1280 = vmatprep.subr.mxu0 0.0
    %1281 = vmatpush1.msra.mxu0 0.0
    %1282 = vmatprep.subr.mxu0 0.0
    %1283 = vmatpush1.msra.mxu0 0.0
    %1284 = vmatprep.subr.mxu0 0.0
    %1285 = vmatpush1.msra.mxu0 0.0
    %1286 = vmatprep.subr.mxu0 0.0
    %1287 = vmatpush1.msra.mxu0 0.0
    %1288 = vmatprep.subr.mxu0 0.0
    %1289 = vmatpush1.msra.mxu0 0.0
    %1290 = vmatprep.subr.mxu0 0.0
    %1291 = vmatpush1.msra.mxu0 0.0
    %1292 = vmatprep.subr.mxu0 0.0
    %1293 = vmatpush1.msra.mxu0 0.0
    %1294 = vmatprep.subr.mxu0 0.0
    %1295 = vmatpush1.msra.mxu0 0.0
    %1296 = vmatprep.subr.mxu0 0.0
    %1297 = vmatpush1.msra.mxu0 0.0
    %1298 = vmatprep.subr.mxu0 0.0
    %1299 = vmatpush1.msra.mxu0 0.0
    %1300 = vmatprep.subr.mxu0 0.0
    %1301 = vmatpush1.msra.mxu0 0.0
    %1302 = vmatprep.subr.mxu0 0.0
    %1303 = vmatpush1.msra.mxu0 0.0
    %1304 = vmatprep.subr.mxu0 0.0
    %1305 = vmatpush1.msra.mxu0 0.0
    %1306 = vmatprep.subr.mxu0 0.0
    %1307 = vmatpush1.msra.mxu0 0.0
    %1308 = vmatprep.subr.mxu0 0.0
    %1309 = vmatpush1.msra.mxu0 0.0
    %1310 = vmatprep.subr.mxu0 0.0
    %1311 = vmatpush1.msra.mxu0 0.0
    %1312 = vmatprep.subr.mxu0 0.0
    %1313 = vmatpush1.msra.mxu0 0.0
    %1314 = vmatprep.subr.mxu0 0.0
    %1315 = vmatpush1.msra.mxu0 0.0
    %1316 = vmatprep.subr.mxu0 0.0
    %1317 = vmatpush1.msra.mxu0 0.0
    %1318 = vmatprep.subr.mxu0 0.0
    %1319 = vmatpush1.msra.mxu0 0.0
    %1320 = vmatprep.subr.mxu0 0.0
    %1321 = vmatpush1.msra.mxu0 0.0
    %1322 = vmatprep.subr.mxu0 0.0
    %1323 = vmatpush1.msra.mxu0 0.0
    %1324 = vmatprep.subr.mxu0 0.0
    %1325 = vmatpush1.msra.mxu0 0.0
    %1326 = vmatprep.subr.mxu0 0.0
    %1327 = vmatpush1.msra.mxu0 0.0
    %1328 = vmatprep.mubr.f32.mxu0 0.0
    %1329 = vmatmul.mubr.f32.gmra.mrb[0].mxu0 %v1262
    %v1330 = vpop.f32.mrb[0].mxu0
    %v1331 = vadd.f32 0.0, %v1330
    %v1332 = vpop.f32.mrb[0].mxu0
    %1333 = vdwg.mxu0
    %1334 = vrot.lane.b32.xlu0 %v118, 64
    %v1335 = vpop.permute.xlu0 %1334
    %v1338 = vsel %vm129, %v1101, 0
    %1340 = vmatprep.subr.mxu0 0.0
    %1341 = vmatpush1.msra.mxu0 %v1335
    %1342 = vmatprep.subr.mxu0 0.0
    %1343 = vmatpush1.msra.mxu0 0.0
    %1344 = vmatprep.subr.mxu0 0.0
    %1345 = vmatpush1.msra.mxu0 0.0
    %1346 = vmatprep.subr.mxu0 0.0
    %1347 = vmatpush1.msra.mxu0 0.0
    %1348 = vmatprep.subr.mxu0 0.0
    %1349 = vmatpush1.msra.mxu0 0.0
    %1350 = vmatprep.subr.mxu0 0.0
    %1351 = vmatpush1.msra.mxu0 0.0
    %1352 = vmatprep.subr.mxu0 0.0
    %1353 = vmatpush1.msra.mxu0 0.0
    %1354 = vmatprep.subr.mxu0 0.0
    %1355 = vmatpush1.msra.mxu0 0.0
    %1356 = vmatprep.subr.mxu0 0.0
    %1357 = vmatpush1.msra.mxu0 0.0
    %1358 = vmatprep.subr.mxu0 0.0
    %1359 = vmatpush1.msra.mxu0 0.0
    %1360 = vmatprep.subr.mxu0 0.0
    %1361 = vmatpush1.msra.mxu0 0.0
    %1362 = vmatprep.subr.mxu0 0.0
    %1363 = vmatpush1.msra.mxu0 0.0
    %1364 = vmatprep.subr.mxu0 0.0
    %1365 = vmatpush1.msra.mxu0 0.0
    %1366 = vmatprep.subr.mxu0 0.0
    %1367 = vmatpush1.msra.mxu0 0.0
    %1368 = vmatprep.subr.mxu0 0.0
    %1369 = vmatpush1.msra.mxu0 0.0
    %1370 = vmatprep.subr.mxu0 0.0
    %1371 = vmatpush1.msra.mxu0 0.0
    %1372 = vmatprep.subr.mxu0 0.0
    %1373 = vmatpush1.msra.mxu0 0.0
    %1374 = vmatprep.subr.mxu0 0.0
    %1375 = vmatpush1.msra.mxu0 0.0
    %1376 = vmatprep.subr.mxu0 0.0
    %1377 = vmatpush1.msra.mxu0 0.0
    %1378 = vmatprep.subr.mxu0 0.0
    %1379 = vmatpush1.msra.mxu0 0.0
    %1380 = vmatprep.subr.mxu0 0.0
    %1381 = vmatpush1.msra.mxu0 0.0
    %1382 = vmatprep.subr.mxu0 0.0
    %1383 = vmatpush1.msra.mxu0 0.0
    %1384 = vmatprep.subr.mxu0 0.0
    %1385 = vmatpush1.msra.mxu0 0.0
    %1386 = vmatprep.subr.mxu0 0.0
    %1387 = vmatpush1.msra.mxu0 0.0
    %1388 = vmatprep.subr.mxu0 0.0
    %1389 = vmatpush1.msra.mxu0 0.0
    %1390 = vmatprep.subr.mxu0 0.0
    %1391 = vmatpush1.msra.mxu0 0.0
    %1392 = vmatprep.subr.mxu0 0.0
    %1393 = vmatpush1.msra.mxu0 0.0
    %1394 = vmatprep.subr.mxu0 0.0
    %1395 = vmatpush1.msra.mxu0 0.0
    %1396 = vmatprep.subr.mxu0 0.0
    %1397 = vmatpush1.msra.mxu0 0.0
    %1398 = vmatprep.subr.mxu0 0.0
    %1399 = vmatpush1.msra.mxu0 0.0
    %1400 = vmatprep.subr.mxu0 0.0
    %1401 = vmatpush1.msra.mxu0 0.0
    %1402 = vmatprep.subr.mxu0 0.0
    %1403 = vmatpush1.msra.mxu0 0.0
    %1404 = vmatprep.mubr.f32.mxu0 0.0
    %1405 = vmatmul.mubr.f32.gmra.mrb[0].mxu0 %v1338
    %v1406 = vpop.f32.mrb[0].mxu0
    %v1407 = vadd.f32 0.0, %v1406
    %v1408 = vpop.f32.mrb[0].mxu0
    %1409 = vdwg.mxu0
    %1410 = vrot.lane.b32.xlu0 %v120, 64
    %v1411 = vpop.permute.xlu0 %1410
    %v1414 = vsel %vm129, %v1102, 0
    %1416 = vmatprep.subr.mxu0 0.0
    %1417 = vmatpush1.msra.mxu0 %v1411
    %1418 = vmatprep.subr.mxu0 0.0
    %1419 = vmatpush1.msra.mxu0 0.0
    %1420 = vmatprep.subr.mxu0 0.0
    %1421 = vmatpush1.msra.mxu0 0.0
    %1422 = vmatprep.subr.mxu0 0.0
    %1423 = vmatpush1.msra.mxu0 0.0
    %1424 = vmatprep.subr.mxu0 0.0
    %1425 = vmatpush1.msra.mxu0 0.0
    %1426 = vmatprep.subr.mxu0 0.0
    %1427 = vmatpush1.msra.mxu0 0.0
    %1428 = vmatprep.subr.mxu0 0.0
    %1429 = vmatpush1.msra.mxu0 0.0
    %1430 = vmatprep.subr.mxu0 0.0
    %1431 = vmatpush1.msra.mxu0 0.0
    %1432 = vmatprep.subr.mxu0 0.0
    %1433 = vmatpush1.msra.mxu0 0.0
    %1434 = vmatprep.subr.mxu0 0.0
    %1435 = vmatpush1.msra.mxu0 0.0
    %1436 = vmatprep.subr.mxu0 0.0
    %1437 = vmatpush1.msra.mxu0 0.0
    %1438 = vmatprep.subr.mxu0 0.0
    %1439 = vmatpush1.msra.mxu0 0.0
    %1440 = vmatprep.subr.mxu0 0.0
    %1441 = vmatpush1.msra.mxu0 0.0
    %1442 = vmatprep.subr.mxu0 0.0
    %1443 = vmatpush1.msra.mxu0 0.0
    %1444 = vmatprep.subr.mxu0 0.0
    %1445 = vmatpush1.msra.mxu0 0.0
    %1446 = vmatprep.subr.mxu0 0.0
    %1447 = vmatpush1.msra.mxu0 0.0
    %1448 = vmatprep.subr.mxu0 0.0
    %1449 = vmatpush1.msra.mxu0 0.0
    %1450 = vmatprep.subr.mxu0 0.0
    %1451 = vmatpush1.msra.mxu0 0.0
    %1452 = vmatprep.subr.mxu0 0.0
    %1453 = vmatpush1.msra.mxu0 0.0
    %1454 = vmatprep.subr.mxu0 0.0
    %1455 = vmatpush1.msra.mxu0 0.0
    %1456 = vmatprep.subr.mxu0 0.0
    %1457 = vmatpush1.msra.mxu0 0.0
    %1458 = vmatprep.subr.mxu0 0.0
    %1459 = vmatpush1.msra.mxu0 0.0
    %1460 = vmatprep.subr.mxu0 0.0
    %1461 = vmatpush1.msra.mxu0 0.0
    %1462 = vmatprep.subr.mxu0 0.0
    %1463 = vmatpush1.msra.mxu0 0.0
    %1464 = vmatprep.subr.mxu0 0.0
    %1465 = vmatpush1.msra.mxu0 0.0
    %1466 = vmatprep.subr.mxu0 0.0
    %1467 = vmatpush1.msra.mxu0 0.0
    %1468 = vmatprep.subr.mxu0 0.0
    %1469 = vmatpush1.msra.mxu0 0.0
    %1470 = vmatprep.subr.mxu0 0.0
    %1471 = vmatpush1.msra.mxu0 0.0
    %1472 = vmatprep.subr.mxu0 0.0
    %1473 = vmatpush1.msra.mxu0 0.0
    %1474 = vmatprep.subr.mxu0 0.0
    %1475 = vmatpush1.msra.mxu0 0.0
    %1476 = vmatprep.subr.mxu0 0.0
    %1477 = vmatpush1.msra.mxu0 0.0
    %1478 = vmatprep.subr.mxu0 0.0
    %1479 = vmatpush1.msra.mxu0 0.0
    %1480 = vmatprep.mubr.f32.mxu0 0.0
    %1481 = vmatmul.mubr.f32.gmra.mrb[0].mxu0 %v1414
    %v1482 = vpop.f32.mrb[0].mxu0
    %v1483 = vadd.f32 0.0, %v1482
    %v1484 = vpop.f32.mrb[0].mxu0
    %1485 = vdwg.mxu0
    %1486 = vrot.lane.b32.xlu0 %v122, 64
    %v1487 = vpop.permute.xlu0 %1486
    %v1490 = vsel %vm129, %v1103, 0
    %1492 = vmatprep.subr.mxu0 0.0
    %1493 = vmatpush1.msra.mxu0 %v1487
    %1494 = vmatprep.subr.mxu0 0.0
    %1495 = vmatpush1.msra.mxu0 0.0
    %1496 = vmatprep.subr.mxu0 0.0
    %1497 = vmatpush1.msra.mxu0 0.0
    %1498 = vmatprep.subr.mxu0 0.0
    %1499 = vmatpush1.msra.mxu0 0.0
    %1500 = vmatprep.subr.mxu0 0.0
    %1501 = vmatpush1.msra.mxu0 0.0
    %1502 = vmatprep.subr.mxu0 0.0
    %1503 = vmatpush1.msra.mxu0 0.0
    %1504 = vmatprep.subr.mxu0 0.0
    %1505 = vmatpush1.msra.mxu0 0.0
    %1506 = vmatprep.subr.mxu0 0.0
    %1507 = vmatpush1.msra.mxu0 0.0
    %1508 = vmatprep.subr.mxu0 0.0
    %1509 = vmatpush1.msra.mxu0 0.0
    %1510 = vmatprep.subr.mxu0 0.0
    %1511 = vmatpush1.msra.mxu0 0.0
    %1512 = vmatprep.subr.mxu0 0.0
    %1513 = vmatpush1.msra.mxu0 0.0
    %1514 = vmatprep.subr.mxu0 0.0
    %1515 = vmatpush1.msra.mxu0 0.0
    %1516 = vmatprep.subr.mxu0 0.0
    %1517 = vmatpush1.msra.mxu0 0.0
    %1518 = vmatprep.subr.mxu0 0.0
    %1519 = vmatpush1.msra.mxu0 0.0
    %1520 = vmatprep.subr.mxu0 0.0
    %1521 = vmatpush1.msra.mxu0 0.0
    %1522 = vmatprep.subr.mxu0 0.0
    %1523 = vmatpush1.msra.mxu0 0.0
    %1524 = vmatprep.subr.mxu0 0.0
    %1525 = vmatpush1.msra.mxu0 0.0
    %1526 = vmatprep.subr.mxu0 0.0
    %1527 = vmatpush1.msra.mxu0 0.0
    %1528 = vmatprep.subr.mxu0 0.0
    %1529 = vmatpush1.msra.mxu0 0.0
    %1530 = vmatprep.subr.mxu0 0.0
    %1531 = vmatpush1.msra.mxu0 0.0
    %1532 = vmatprep.subr.mxu0 0.0
    %1533 = vmatpush1.msra.mxu0 0.0
    %1534 = vmatprep.subr.mxu0 0.0
    %1535 = vmatpush1.msra.mxu0 0.0
    %1536 = vmatprep.subr.mxu0 0.0
    %1537 = vmatpush1.msra.mxu0 0.0
    %1538 = vmatprep.subr.mxu0 0.0
    %1539 = vmatpush1.msra.mxu0 0.0
    %1540 = vmatprep.subr.mxu0 0.0
    %1541 = vmatpush1.msra.mxu0 0.0
    %1542 = vmatprep.subr.mxu0 0.0
    %1543 = vmatpush1.msra.mxu0 0.0
    %1544 = vmatprep.subr.mxu0 0.0
    %1545 = vmatpush1.msra.mxu0 0.0
    %1546 = vmatprep.subr.mxu0 0.0
    %1547 = vmatpush1.msra.mxu0 0.0
    %1548 = vmatprep.subr.mxu0 0.0
    %1549 = vmatpush1.msra.mxu0 0.0
    %1550 = vmatprep.subr.mxu0 0.0
    %1551 = vmatpush1.msra.mxu0 0.0
    %1552 = vmatprep.subr.mxu0 0.0
    %1553 = vmatpush1.msra.mxu0 0.0
    %1554 = vmatprep.subr.mxu0 0.0
    %1555 = vmatpush1.msra.mxu0 0.0
    %1556 = vmatprep.mubr.f32.mxu0 0.0
    %1557 = vmatmul.mubr.f32.gmra.mrb[0].mxu0 %v1490
    %v1558 = vpop.f32.mrb[0].mxu0
    %v1559 = vadd.f32 0.0, %v1558
    %v1560 = vpop.f32.mrb[0].mxu0
    %1561 = vdwg.mxu0
    %1562 = vrot.lane.b32.xlu0 %v124, 64
    %v1563 = vpop.permute.xlu0 %1562
    %v1566 = vsel %vm129, %v1104, 0
    %1568 = vmatprep.subr.mxu0 0.0
    %1569 = vmatpush1.msra.mxu0 %v1563
    %1570 = vmatprep.subr.mxu0 0.0
    %1571 = vmatpush1.msra.mxu0 0.0
    %1572 = vmatprep.subr.mxu0 0.0
    %1573 = vmatpush1.msra.mxu0 0.0
    %1574 = vmatprep.subr.mxu0 0.0
    %1575 = vmatpush1.msra.mxu0 0.0
    %1576 = vmatprep.subr.mxu0 0.0
    %1577 = vmatpush1.msra.mxu0 0.0
    %1578 = vmatprep.subr.mxu0 0.0
    %1579 = vmatpush1.msra.mxu0 0.0
    %1580 = vmatprep.subr.mxu0 0.0
    %1581 = vmatpush1.msra.mxu0 0.0
    %1582 = vmatprep.subr.mxu0 0.0
    %1583 = vmatpush1.msra.mxu0 0.0
    %1584 = vmatprep.subr.mxu0 0.0
    %1585 = vmatpush1.msra.mxu0 0.0
    %1586 = vmatprep.subr.mxu0 0.0
    %1587 = vmatpush1.msra.mxu0 0.0
    %1588 = vmatprep.subr.mxu0 0.0
    %1589 = vmatpush1.msra.mxu0 0.0
    %1590 = vmatprep.subr.mxu0 0.0
    %1591 = vmatpush1.msra.mxu0 0.0
    %1592 = vmatprep.subr.mxu0 0.0
    %1593 = vmatpush1.msra.mxu0 0.0
    %1594 = vmatprep.subr.mxu0 0.0
    %1595 = vmatpush1.msra.mxu0 0.0
    %1596 = vmatprep.subr.mxu0 0.0
    %1597 = vmatpush1.msra.mxu0 0.0
    %1598 = vmatprep.subr.mxu0 0.0
    %1599 = vmatpush1.msra.mxu0 0.0
    %1600 = vmatprep.subr.mxu0 0.0
    %1601 = vmatpush1.msra.mxu0 0.0
    %1602 = vmatprep.subr.mxu0 0.0
    %1603 = vmatpush1.msra.mxu0 0.0
    %1604 = vmatprep.subr.mxu0 0.0
    %1605 = vmatpush1.msra.mxu0 0.0
    %1606 = vmatprep.subr.mxu0 0.0
    %1607 = vmatpush1.msra.mxu0 0.0
    %1608 = vmatprep.subr.mxu0 0.0
    %1609 = vmatpush1.msra.mxu0 0.0
    %1610 = vmatprep.subr.mxu0 0.0
    %1611 = vmatpush1.msra.mxu0 0.0
    %1612 = vmatprep.subr.mxu0 0.0
    %1613 = vmatpush1.msra.mxu0 0.0
    %1614 = vmatprep.subr.mxu0 0.0
    %1615 = vmatpush1.msra.mxu0 0.0
    %1616 = vmatprep.subr.mxu0 0.0
    %1617 = vmatpush1.msra.mxu0 0.0
    %1618 = vmatprep.subr.mxu0 0.0
    %1619 = vmatpush1.msra.mxu0 0.0
    %1620 = vmatprep.subr.mxu0 0.0
    %1621 = vmatpush1.msra.mxu0 0.0
    %1622 = vmatprep.subr.mxu0 0.0
    %1623 = vmatpush1.msra.mxu0 0.0
    %1624 = vmatprep.subr.mxu0 0.0
    %1625 = vmatpush1.msra.mxu0 0.0
    %1626 = vmatprep.subr.mxu0 0.0
    %1627 = vmatpush1.msra.mxu0 0.0
    %1628 = vmatprep.subr.mxu0 0.0
    %1629 = vmatpush1.msra.mxu0 0.0
    %1630 = vmatprep.subr.mxu0 0.0
    %1631 = vmatpush1.msra.mxu0 0.0
    %1632 = vmatprep.mubr.f32.mxu0 0.0
    %1633 = vmatmul.mubr.f32.gmra.mrb[0].mxu0 %v1566
    %v1634 = vpop.f32.mrb[0].mxu0
    %v1635 = vadd.f32 0.0, %v1634
    %v1636 = vpop.f32.mrb[0].mxu0
    %1637 = vdwg.mxu0
    %1638 = vrot.lane.b32.xlu0 %v126, 64
    %v1639 = vpop.permute.xlu0 %1638
    %v1642 = vsel %vm129, %v1105, 0
    %1644 = vmatprep.subr.mxu0 0.0
    %1645 = vmatpush1.msra.mxu0 %v1639
    %1646 = vmatprep.subr.mxu0 0.0
    %1647 = vmatpush1.msra.mxu0 0.0
    %1648 = vmatprep.subr.mxu0 0.0
    %1649 = vmatpush1.msra.mxu0 0.0
    %1650 = vmatprep.subr.mxu0 0.0
    %1651 = vmatpush1.msra.mxu0 0.0
    %1652 = vmatprep.subr.mxu0 0.0
    %1653 = vmatpush1.msra.mxu0 0.0
    %1654 = vmatprep.subr.mxu0 0.0
    %1655 = vmatpush1.msra.mxu0 0.0
    %1656 = vmatprep.subr.mxu0 0.0
    %1657 = vmatpush1.msra.mxu0 0.0
    %1658 = vmatprep.subr.mxu0 0.0
    %1659 = vmatpush1.msra.mxu0 0.0
    %1660 = vmatprep.subr.mxu0 0.0
    %1661 = vmatpush1.msra.mxu0 0.0
    %1662 = vmatprep.subr.mxu0 0.0
    %1663 = vmatpush1.msra.mxu0 0.0
    %1664 = vmatprep.subr.mxu0 0.0
    %1665 = vmatpush1.msra.mxu0 0.0
    %1666 = vmatprep.subr.mxu0 0.0
    %1667 = vmatpush1.msra.mxu0 0.0
    %1668 = vmatprep.subr.mxu0 0.0
    %1669 = vmatpush1.msra.mxu0 0.0
    %1670 = vmatprep.subr.mxu0 0.0
    %1671 = vmatpush1.msra.mxu0 0.0
    %1672 = vmatprep.subr.mxu0 0.0
    %1673 = vmatpush1.msra.mxu0 0.0
    %1674 = vmatprep.subr.mxu0 0.0
    %1675 = vmatpush1.msra.mxu0 0.0
    %1676 = vmatprep.subr.mxu0 0.0
    %1677 = vmatpush1.msra.mxu0 0.0
    %1678 = vmatprep.subr.mxu0 0.0
    %1679 = vmatpush1.msra.mxu0 0.0
    %1680 = vmatprep.subr.mxu0 0.0
    %1681 = vmatpush1.msra.mxu0 0.0
    %1682 = vmatprep.subr.mxu0 0.0
    %1683 = vmatpush1.msra.mxu0 0.0
    %1684 = vmatprep.subr.mxu0 0.0
    %1685 = vmatpush1.msra.mxu0 0.0
    %1686 = vmatprep.subr.mxu0 0.0
    %1687 = vmatpush1.msra.mxu0 0.0
    %1688 = vmatprep.subr.mxu0 0.0
    %1689 = vmatpush1.msra.mxu0 0.0
    %1690 = vmatprep.subr.mxu0 0.0
    %1691 = vmatpush1.msra.mxu0 0.0
    %1692 = vmatprep.subr.mxu0 0.0
    %1693 = vmatpush1.msra.mxu0 0.0
    %1694 = vmatprep.subr.mxu0 0.0
    %1695 = vmatpush1.msra.mxu0 0.0
    %1696 = vmatprep.subr.mxu0 0.0
    %1697 = vmatpush1.msra.mxu0 0.0
    %1698 = vmatprep.subr.mxu0 0.0
    %1699 = vmatpush1.msra.mxu0 0.0
    %1700 = vmatprep.subr.mxu0 0.0
    %1701 = vmatpush1.msra.mxu0 0.0
    %1702 = vmatprep.subr.mxu0 0.0
    %1703 = vmatpush1.msra.mxu0 0.0
    %1704 = vmatprep.subr.mxu0 0.0
    %1705 = vmatpush1.msra.mxu0 0.0
    %1706 = vmatprep.subr.mxu0 0.0
    %1707 = vmatpush1.msra.mxu0 0.0
    %1708 = vmatprep.mubr.f32.mxu0 0.0
    %1709 = vmatmul.mubr.f32.gmra.mrb[0].mxu0 %v1642
    %v1710 = vpop.f32.mrb[0].mxu0
    %v1711 = vadd.f32 0.0, %v1710
    %v1712 = vpop.f32.mrb[0].mxu0
    %1713 = vdwg.mxu0
    %v1714 = vsel %vm129, %v1179, inf
    %v1715 = vsel %vm129, %v1255, inf
    %v1716 = vsel %vm129, %v1331, inf
    %v1717 = vsel %vm129, %v1407, inf
    %v1718 = vsel %vm129, %v1483, inf
    %v1719 = vmin.f32 %v1714, %v1718
    %v1720 = vsel %vm129, %v1559, inf
    %v1721 = vmin.f32 %v1715, %v1720
    %v1722 = vsel %vm129, %v1635, inf
    %v1723 = vmin.f32 %v1716, %v1722
    %v1724 = vsel %vm129, %v1711, inf
    %v1725 = vmin.f32 %v1717, %v1724
    %v1726 = vmin.f32 %v1719, %v1721
    %v1727 = vmin.f32 %v1723, %v1725
    %v1728 = vmin.f32 %v1726, %v1727
    %1729 = vmin.xlane.f32.xlu0 %v1728
    %v1730 = vpop.xlane.xlu0 %1729
    %v1731 = vrot.slane %v1730, 4
    %v1732 = vmin.f32 %v1730, %v1731
    %v1733 = vrot.slane %v1732, 2
    %v1734 = vmin.f32 %v1732, %v1733
    %v1735 = vrot.slane %v1734, 1
    %v1736 = vmin.f32 %v1734, %v1735
    %s1737 = vtos %v1736
    %s1738 = smin.f32 %s1737, 0.0
    %v1739 = vsel %vm129, %v1179, -inf
    %v1740 = vsel %vm129, %v1255, -inf
    %v1741 = vsel %vm129, %v1331, -inf
    %v1742 = vsel %vm129, %v1407, -inf
    %v1743 = vsel %vm129, %v1483, -inf
    %v1744 = vmax.f32 %v1739, %v1743
    %v1745 = vsel %vm129, %v1559, -inf
    %v1746 = vmax.f32 %v1740, %v1745
    %v1747 = vsel %vm129, %v1635, -inf
    %v1748 = vmax.f32 %v1741, %v1747
    %v1749 = vsel %vm129, %v1711, -inf
    %v1750 = vmax.f32 %v1742, %v1749
    %v1751 = vmax.f32 %v1744, %v1746
    %v1752 = vmax.f32 %v1748, %v1750
    %v1753 = vmax.f32 %v1751, %v1752
    %1754 = vmax.xlane.f32.xlu0 %v1753
    %v1755 = vpop.xlane.xlu0 %1754
    %v1756 = vrot.slane %v1755, 4
    %v1757 = vmax.f32 %v1755, %v1756
    %v1758 = vrot.slane %v1757, 2
    %v1759 = vmax.f32 %v1757, %v1758
    %v1760 = vrot.slane %v1759, 1
    %v1761 = vmax.f32 %v1759, %v1760
    %s1762 = vtos %v1761
    %s1763 = smax.f32 %s1762, 0.0
    %s1764 = ssub.f32 %s1763, %s1738
    %v1765 = vrcp.pop 255.0
    %s1766 = vtos %v1765
    %s1767 = smul.f32 %s1764, %s1766
    %s1768 = smax.f32 %s1767, 1.1920929e-07
    %v1769 = vstv %s1768
    %v1770 = vrcp.pop %v1769
    %s1771 = vtos %v1770
    %s1772 = smul.f32 %s1738, %s1771
    %s1773 = ssub.f32 0.0, %s1772
    %s1774 = scvt.f32.s32 %s1773
    %s1775 = scvt.s32.f32 %s1774
    %s1776 = sand.u32 2147483647, %s1775
    %s1777 = sand.u32 %s1773, 2147483648
    %s1778 = sor.u32 %s1776, %s1777
    %s1779 = sand.u32 2147483647, %s1773
    %p1780 = scmp.lt.f32.partialorder %s1779, 2.1474836e+09
    %s1781 = scalar_select %p1780, %s1778, %s1773
    %s1782 = smax.f32 %s1781, 0.0
    %s1783 = smin.f32 %s1782, 255.0
    %v1784 = vstv %s1771
    %v1785 = vmul.f32 %v1179, %v1784
    %v1786 = vmul.f32 %v1255, %v1784
    %v1787 = vmul.f32 %v1331, %v1784
    %v1788 = vmul.f32 %v1407, %v1784
    %v1789 = vmul.f32 %v1483, %v1784
    %v1790 = vmul.f32 %v1559, %v1784
    %v1791 = vmul.f32 %v1635, %v1784
    %v1792 = vmul.f32 %v1711, %v1784
    %v1793 = vstv %s1783
    %v1794 = vadd.f32 %v1785, %v1793
    %v1795 = vadd.f32 %v1786, %v1793
    %v1796 = vadd.f32 %v1787, %v1793
    %v1797 = vadd.f32 %v1788, %v1793
    %v1798 = vadd.f32 %v1789, %v1793
    %v1799 = vadd.f32 %v1790, %v1793
    %v1800 = vadd.f32 %v1791, %v1793
    %v1801 = vadd.f32 %v1792, %v1793
    %v1802 = vround.ne.pseudo %v1794
    %v1803 = vround.ne.pseudo %v1795
    %v1804 = vround.ne.pseudo %v1796
    %v1805 = vround.ne.pseudo %v1797
    %v1806 = vround.ne.pseudo %v1798
    %v1807 = vround.ne.pseudo %v1799
    %v1808 = vround.ne.pseudo %v1800
    %v1809 = vround.ne.pseudo %v1801
    %v1810 = vmax.f32 %v1802, 0.0
    %v1811 = vmax.f32 %v1803, 0.0
    %v1812 = vmax.f32 %v1804, 0.0
    %v1813 = vmax.f32 %v1805, 0.0
    %v1814 = vmax.f32 %v1806, 0.0
    %v1815 = vmax.f32 %v1807, 0.0
    %v1816 = vmax.f32 %v1808, 0.0
    %v1817 = vmax.f32 %v1809, 0.0
    %v1818 = vmin.f32 %v1810, 255.0
    %v1819 = vmin.f32 %v1811, 255.0
    %v1820 = vmin.f32 %v1812, 255.0
    %v1821 = vmin.f32 %v1813, 255.0
    %v1822 = vmin.f32 %v1814, 255.0
    %v1823 = vmin.f32 %v1815, 255.0
    %v1824 = vmin.f32 %v1816, 255.0
    %v1825 = vmin.f32 %v1817, 255.0
    %v1826 = vsub.f32 %v1818, %v1793
    %v1827 = vsub.f32 %v1819, %v1793
    %v1828 = vsub.f32 %v1820, %v1793
    %v1829 = vsub.f32 %v1821, %v1793
    %v1830 = vsub.f32 %v1822, %v1793
    %v1831 = vsub.f32 %v1823, %v1793
    %v1832 = vsub.f32 %v1824, %v1793
    %v1833 = vsub.f32 %v1825, %v1793
    %v1834 = vstv %s1768
    %v1835 = vmul.f32 %v1826, %v1834
    %v1836 = vmul.f32 %v1827, %v1834
    %v1837 = vmul.f32 %v1828, %v1834
    %v1838 = vmul.f32 %v1829, %v1834
    %v1839 = vmul.f32 %v1830, %v1834
    %v1840 = vmul.f32 %v1831, %v1834
    %v1841 = vmul.f32 %v1832, %v1834
    %v1842 = vmul.f32 %v1833, %v1834
    %1845 = vrot.lane.b32.xlu0 %v1837, 8
    %v1846 = vpop.permute.xlu0 %1845
    %1847 = vrot.lane.b32.xlu0 %v1838, 8
    %v1848 = vpop.permute.xlu0 %1847
    %1853 = vrot.lane.b32.xlu0 %v1839, 16
    %v1854 = vpop.permute.xlu0 %1853
    %1855 = vrot.lane.b32.xlu0 %v1840, 16
    %v1856 = vpop.permute.xlu0 %1855
    %1861 = vrot.lane.b32.xlu0 %v1841, 24
    %v1862 = vpop.permute.xlu0 %1861
    %1863 = vrot.lane.b32.xlu0 %v1842, 24
    %v1864 = vpop.permute.xlu0 %1863
    %v1867 = vsel %vm129, %v1835, %v1846
    %v1868 = vsel %vm129, %v1836, %v1848
    %vm1869 = vcmask 130048
    %v1870 = vsel %vm1869, %v1867, %v1854
    %v1871 = vsel %vm1869, %v1868, %v1856
    %vm1872 = vcmask 195584
    %v1873 = vsel %vm1872, %v1870, %v1862
    %v1874 = vsel %vm1872, %v1871, %v1864
    %1875 = vst.msk [vmem:[#allocation2] sm:$0xff] %vm31, %v1873
    %1876 = vst.msk [vmem:[#allocation2 + $0x8] sm:$0xff] %vm31, %v1874
    // Predicated region
    $region18: #{qaware_bert_self_attention.1} parent=1 // pred_check
      _
    $region19: #{qaware_bert_self_attention.1} parent=1 // pred_check_branch
      %1878 = sbr.rel (0) target = $region21
    $region20: #{qaware_bert_self_attention.1} parent=1 // pred_region
      %s1880 = ssub.s32 256, 256
      %1881 = vsyncadd [#allocation3], %s1880
      %s1882 = sshll.u32 [#allocation2], 4
      %s1883 = int_to_ptr.vmem [resolvable:$true] %s1882
      %1888 = dma.vmem_to_hbm [thread:$0]  %s1883, 256, %s4, [#allocation3], 128, 128, 8
    $region21: #{qaware_bert_self_attention.1} parent=1 // pred_fallthru
      _
    // Predicated region
    $region22: #{qaware_bert_self_attention.1} parent=1 // pred_check
      _
    $region23: #{qaware_bert_self_attention.1} parent=1 // pred_check_branch
      %1890 = sbr.rel (0) target = $region25
    $region24: #{qaware_bert_self_attention.1} parent=1 // pred_region
      %1891 = dma.done [#allocation3], 256
    $region25: #{qaware_bert_self_attention.1} parent=1 // pred_fallthru
      _
    %1892 = vsyncpa [#allocation3], 1

</llo_original>
